<compile_context>
chip_gen: v6e
topology: v6e:2x2x1
jax: 0.10.0
libtpu: 0.0.40
codegen_flags: <defaults>
</compile_context>

<pallas_src>
import math

import jax
import jax.numpy as jnp
from jax.experimental import pallas as pl
from jax.experimental.pallas import tpu as pltpu


def _round_up(x, m):
    return ((x + m - 1) // m) * m


def _vmem_capacity_bytes():
    """Physical VMEM per TensorCore (generation-aware, with a safe fallback)."""
    try:
        return int(pltpu.get_tpu_info().vmem_capacity_bytes)
    except Exception:
        return 64 * 1024 * 1024  # conservative: v7x has the smallest VMEM


def _select_tiles(n, f_in, f_out_p, vmem_budget):
    """Pick (tm, tk): as large as the budget allows, >= 2 row tiles for v7x."""
    n128 = _round_up(n, 128)
    tm = min(512, n128)
    # Keep the "parallel" row axis at >= 2 tiles when possible so v7x's two
    # TensorCores both get work (no effect on single-TC v5e/v6e).
    while tm > 128 and pl.cdiv(n128, tm) < 2:
        tm //= 2
    tk = min(512, n128)

    def working_set(tm_, tk_):
        adj_b = 2 * tm_ * tk_ * 2          # double-buffered bf16 adj tiles
        x_b = 2 * tk_ * f_in * 2           # double-buffered bf16 x K-tiles
        w_b = 2 * f_in * f_out_p * 2       # resident bf16 weight
        bias_b = 2 * f_out_p * 4           # resident f32 bias
        out_b = 2 * tm_ * f_out_p * 4      # resident f32 output/accumulator tile
        return adj_b + x_b + w_b + bias_b + out_b

    while working_set(tm, tk) > vmem_budget and tk > 128:
        tk //= 2
    while working_set(tm, tk) > vmem_budget and tm > 128:
        tm //= 2
    return tm, tk


# ---------------- fused kernel: out = adj @ (x @ W) + bias -------------------
def _gcn_fused_kernel(adj_ref, x_ref, w_ref, b_ref, out_ref):
    # Grid: (row tiles [parallel], K tiles [arbitrary, last]).
    k = pl.program_id(1)

    # Recompute this K-tile of `support` on the fly (W is VMEM-resident);
    # both matmuls take bf16 operands with f32 MXU accumulation.
    support = jnp.dot(
        x_ref[...], w_ref[...], preferred_element_type=jnp.float32
    ).astype(jnp.bfloat16)
    partial = jnp.dot(adj_ref[...], support, preferred_element_type=jnp.float32)

    # The output block index is k-invariant -> the f32 output tile itself is
    # the resident accumulator; fold the bias into the k == 0 init.
    @pl.when(k == 0)
    def _():
        out_ref[...] = partial + b_ref[...]

    @pl.when(k != 0)
    def _():
        out_ref[...] += partial


# ------------------------------- public wrapper ------------------------------
def graph_convolution(x, adj, weight, bias):
    """GCN layer: adj @ (x @ weight) + bias.

    For best performance pass `adj` already cast to bfloat16 (cache it across
    layers / steps); the cast below is then a no-op and the kernel's own DMA
    is the only N^2 read of adj.
    """
    n, f_in = x.shape
    f_out = weight.shape[1]
    assert adj.shape == (n, n)

    f_out_p = _round_up(f_out, 128)  # lane-dense, unmasked output stores

    cap = _vmem_capacity_bytes()
    # ~40 MiB on v7x (64 MiB VMEM), 64 MiB on v5e/v6e (128 MiB VMEM).
    vmem_limit = max(min(cap * 5 // 8, 64 * 1024 * 1024), 32 * 1024 * 1024)
    tm, tk = _select_tiles(
        n, f_in, f_out_p, vmem_budget=vmem_limit - 8 * 1024 * 1024
    )

    n_rows_p = _round_up(n, tm)  # padded rows of adj / output
    n_cols_p = _round_up(n, tk)  # padded contraction dim (cols of adj / rows of x)

    # adj: no-op if the caller cached a bf16 adj; pad only if the tiles do not
    # already divide N (zero padding does not change the valid region).
    adj = adj.astype(jnp.bfloat16)
    if (n_rows_p, n_cols_p) != (n, n):
        adj = jnp.pad(adj, ((0, n_rows_p - n), (0, n_cols_p - n)))

    # Small (non-N^2) operands: bf16 MXU operands, f32 bias.
    x_p = x.astype(jnp.bfloat16)
    if n_cols_p != n:
        x_p = jnp.pad(x_p, ((0, n_cols_p - n), (0, 0)))
    w_p = weight.astype(jnp.bfloat16)
    if f_out_p != f_out:
        w_p = jnp.pad(w_p, ((0, 0), (0, f_out_p - f_out)))
    b_p = bias.astype(jnp.float32)
    if f_out_p != f_out:
        b_p = jnp.pad(b_p, (0, f_out_p - f_out))
    b_p = b_p.reshape(1, f_out_p)

    grid = (n_rows_p // tm, n_cols_p // tk)  # reduction (K) axis last

    out_p = pl.pallas_call(
        _gcn_fused_kernel,
        out_shape=jax.ShapeDtypeStruct((n_rows_p, f_out_p), jnp.float32),
        grid_spec=pltpu.PrefetchScalarGridSpec(
            num_scalar_prefetch=0,
            grid=grid,
            in_specs=[
                pl.BlockSpec((tm, tk), lambda i, k: (i, k)),         # adj tile (bf16)
                pl.BlockSpec((tk, f_in), lambda i, k: (k, 0)),       # x K-tile (bf16)
                pl.BlockSpec((f_in, f_out_p), lambda i, k: (0, 0)),  # weight (resident)
                pl.BlockSpec((1, f_out_p), lambda i, k: (0, 0)),     # bias (f32)
            ],
            out_specs=pl.BlockSpec((tm, f_out_p), lambda i, k: (i, 0)),
        ),
        compiler_params=pltpu.CompilerParams(
            dimension_semantics=("parallel", "arbitrary"),
            vmem_limit_bytes=int(vmem_limit),
        ),
    )(adj, x_p, w_p, b_p)

    return out_p[:n, :f_out].astype(x.dtype)


def init_params(key, in_features, out_features):
    """Deterministic re-implementation of GraphConvolution.reset_parameters."""
    stdv = 1.0 / math.sqrt(out_features)
    kw, kb = jax.random.split(key)
    weight = jax.random.uniform(
        kw, (in_features, out_features), jnp.float32, minval=-stdv, maxval=stdv
    )
    bias = jax.random.uniform(
        kb, (out_features,), jnp.float32, minval=-stdv, maxval=stdv
    )
    return weight, bias


if __name__ == "__main__":
    # Small, TPU-friendly shapes: N nodes, in_features, out_features.
    N, F_IN, F_OUT = 512, 32, 128

    key = jax.random.PRNGKey(0)
    k_x, k_adj, k_params = jax.random.split(key, 3)

    x = jax.random.normal(k_x, (N, F_IN), jnp.float32)

    # Dense "sparse-like" adjacency: random binary mask + self loops, row-normalized.
    raw = (jax.random.uniform(k_adj, (N, N)) < 0.1).astype(jnp.float32)
    adj = raw + jnp.eye(N, dtype=jnp.float32)
    adj = adj / jnp.sum(adj, axis=1, keepdims=True)

    weight, bias = init_params(k_params, F_IN, F_OUT)

    # Cache the bf16 adjacency once (it is reused every layer / training step),
    # so no standalone N^2 cast pass sits in front of the kernel's input DMA.
    adj_bf16 = jax.block_until_ready(adj.astype(jnp.bfloat16))

    out = graph_convolution(x, adj_bf16, weight, bias)
    out = jax.block_until_ready(out)

    # Pure-JAX f32 reference (kernel uses bf16 adj/x/W with f32 accumulation).
    ref = adj @ (x @ weight) + bias
    assert out.shape == (N, F_OUT)
    err = float(jnp.max(jnp.abs(out - ref)))
    assert jnp.allclose(out, ref, atol=2e-2, rtol=2e-2), err

    print("KERNEL_OK")
</pallas_src>

<mosaic_0001>
module attributes {stable_mosaic.version = 11 : i64} {
  func.func @_gcn_fused_kernel(%arg0: i32, %arg1: i32, %arg2: memref<256x512xbf16, #tpu.memory_space<vmem>>, %arg3: memref<512x32xbf16, #tpu.memory_space<vmem>>, %arg4: memref<32x128xbf16, #tpu.memory_space<vmem>>, %arg5: memref<1x128xf32, #tpu.memory_space<vmem>>, %arg6: memref<256x128xf32, #tpu.memory_space<vmem>>) attributes {dimension_semantics = [#tpu.dimension_semantics<parallel>, #tpu.dimension_semantics<arbitrary>], iteration_bounds = array<i64: 2, 1>, scalar_prefetch = 0 : i64, scratch_operands = 0 : i64, tpu.core_type = #tpu.core_type<tc>, window_params = [{transform_indices = @transform_0, window_bounds = array<i64: 256, 512>}, {transform_indices = @transform_1, window_bounds = array<i64: 512, 32>}, {pipeline_mode = #tpu.pipeline_mode<synchronous>, transform_indices = @transform_2, window_bounds = array<i64: 32, 128>}, {pipeline_mode = #tpu.pipeline_mode<synchronous>, transform_indices = @transform_3, window_bounds = array<i64: 1, 128>}, {transform_indices = @transform_4, window_bounds = array<i64: 256, 128>}]} {
    %c0 = arith.constant 0 : index
    %c0_0 = arith.constant 0 : index
    %0 = vector.load %arg3[%c0, %c0_0] : memref<512x32xbf16, #tpu.memory_space<vmem>>, vector<512x32xbf16>
    %c0_1 = arith.constant 0 : index
    %c0_2 = arith.constant 0 : index
    %1 = vector.load %arg4[%c0_1, %c0_2] : memref<32x128xbf16, #tpu.memory_space<vmem>>, vector<32x128xbf16>
    %cst = arith.constant dense<0.000000e+00> : vector<512x128xf32>
    %2 = tpu.matmul %0, %1, %cst {dimension_numbers = #tpu.dot_dimension_numbers<[1], [0], [0], [1], [0, 0, 1, 1], [], []>} : vector<512x32xbf16>, vector<32x128xbf16>, vector<512x128xf32> -> vector<512x128xf32>
    %3 = arith.truncf %2 : vector<512x128xf32> to vector<512x128xbf16>
    %c0_3 = arith.constant 0 : index
    %c0_4 = arith.constant 0 : index
    %4 = vector.load %arg2[%c0_3, %c0_4] : memref<256x512xbf16, #tpu.memory_space<vmem>>, vector<256x512xbf16>
    %cst_5 = arith.constant dense<0.000000e+00> : vector<256x128xf32>
    %5 = tpu.matmul %4, %3, %cst_5 {dimension_numbers = #tpu.dot_dimension_numbers<[1], [0], [0], [1], [0, 0, 1, 1], [], []>} : vector<256x512xbf16>, vector<512x128xbf16>, vector<256x128xf32> -> vector<256x128xf32>
    %c0_i32 = arith.constant 0 : i32
    %6 = arith.cmpi eq, %arg1, %c0_i32 : i32
    %7 = arith.extui %6 : i1 to i32
    %c0_i32_6 = arith.constant 0 : i32
    %8 = arith.cmpi ne, %7, %c0_i32_6 : i32
    scf.if %8 {
      %c0_9 = arith.constant 0 : index
      %c0_10 = arith.constant 0 : index
      %12 = vector.load %arg5[%c0_9, %c0_10] : memref<1x128xf32, #tpu.memory_space<vmem>>, vector<1x128xf32>
      %13 = vector.broadcast %12 : vector<1x128xf32> to vector<256x128xf32>
      %14 = arith.addf %5, %13 : vector<256x128xf32>
      %c0_11 = arith.constant 0 : index
      %c0_12 = arith.constant 0 : index
      %15 = vector.load %arg6[%c0_11, %c0_12] : memref<256x128xf32, #tpu.memory_space<vmem>>, vector<256x128xf32>
      tpu.vector_store %arg6[%c0_11, %c0_12], %14 {strides = array<i32>} : memref<256x128xf32, #tpu.memory_space<vmem>>, vector<256x128xf32>,
    } else {
    }
    %c0_i32_7 = arith.constant 0 : i32
    %9 = arith.cmpi ne, %arg1, %c0_i32_7 : i32
    %10 = arith.extui %9 : i1 to i32
    %c0_i32_8 = arith.constant 0 : i32
    %11 = arith.cmpi ne, %10, %c0_i32_8 : i32
    scf.if %11 {
      %c0_9 = arith.constant 0 : index
      %c0_10 = arith.constant 0 : index
      %12 = vector.load %arg6[%c0_9, %c0_10] : memref<256x128xf32, #tpu.memory_space<vmem>>, vector<256x128xf32>
      %13 = arith.addf %12, %5 : vector<256x128xf32>
      %c0_11 = arith.constant 0 : index
      %c0_12 = arith.constant 0 : index
      %14 = vector.load %arg6[%c0_11, %c0_12] : memref<256x128xf32, #tpu.memory_space<vmem>>, vector<256x128xf32>
      tpu.vector_store %arg6[%c0_11, %c0_12], %13 {strides = array<i32>} : memref<256x128xf32, #tpu.memory_space<vmem>>, vector<256x128xf32>,
    } else {
    }
    return
  }
  func.func @transform_0(%arg0: i32, %arg1: i32) -> (i32, i32) {
    %c0_i32 = arith.constant 0 : i32
    return %arg0, %arg1 : i32, i32
  }
  func.func @transform_1(%arg0: i32, %arg1: i32) -> (i32, i32) {
    %c0_i32 = arith.constant 0 : i32
    %c0_i32_0 = arith.constant 0 : i32
    return %arg1, %c0_i32 : i32, i32
  }
  func.func @transform_2(%arg0: i32, %arg1: i32) -> (i32, i32) {
    %c0_i32 = arith.constant 0 : i32
    %c0_i32_0 = arith.constant 0 : i32
    %c0_i32_1 = arith.constant 0 : i32
    return %c0_i32, %c0_i32_0 : i32, i32
  }
  func.func @transform_3(%arg0: i32, %arg1: i32) -> (i32, i32) {
    %c0_i32 = arith.constant 0 : i32
    %c0_i32_0 = arith.constant 0 : i32
    %c0_i32_1 = arith.constant 0 : i32
    return %c0_i32, %c0_i32_0 : i32, i32
  }
  func.func @transform_4(%arg0: i32, %arg1: i32) -> (i32, i32) {
    %c0_i32 = arith.constant 0 : i32
    %c0_i32_0 = arith.constant 0 : i32
    return %arg0, %c0_i32 : i32, i32
  }
}

</mosaic_0001>

<llo_original>
// kernel: tpu_custom_call.1
$region0: #{tpu_custom_call.1}
  #allocation0 [shape = 'u32[]', space=smem, size = 0x4, offset = 0x4, fixed_abs, tag = 'smem constant byte address 0x4 - core index']
  #allocation1 [shape = 'u32[144,128]{1,0:T(1,128)}', space=vmem, size = 0x12000, scoped, tag = 'internal scratch']
  %s0 = inlined_call_operand.hbm [shape: bf16[512,512], index: 0, kind: input, shape index: {}]
  %s1 = inlined_call_operand.vmem [shape: bf16[512,32], index: 1, kind: input, shape index: {}]
  %s2 = inlined_call_operand.vmem [shape: bf16[32,128], index: 2, kind: input, shape index: {}]
  %s3 = inlined_call_operand.vmem [shape: f32[1,128], index: 3, kind: input, shape index: {}]
  %s4 = inlined_call_operand.hbm [shape: f32[512,128], index: 4, kind: output, shape index: {}]
  %s5 = sld [smem:[#allocation0]]
  $region61: #{tpu_custom_call.1} parent=0
    _
  %s7 = ssub.s32 1, %s5
  %s8 = scalar_select 0, %s7, %s5
  $region1: #{tpu_custom_call.1} parent=0
    #allocation2 [shape = 'u8[524288]{0}', space=vmem, size = 0x80000, scoped, tag = 'input window, operand 0']
    #allocation3 [shape = 's32[2]{0}', space=sflag, size = 0x8, scoped, tag = 'scoped memory for tpu_custom_call.1']
    #allocation4 [shape = 's32[2]{0}', space=sflag, size = 0x8, scoped, tag = 'scoped memory for tpu_custom_call.1']
    #allocation5 [shape = 'u8[262144]{0}', space=vmem, size = 0x40000, scoped, tag = 'output window, operand 0']
    %9 = vsyncpa [#allocation3], 0
    %s10 = scalar_lea.sflag [#allocation3], 1
    %11 = vsyncpa %s10, 0
    %12 = vsyncpa [#allocation4], 0
    %s13 = scalar_lea.sflag [#allocation4], 1
    %14 = vsyncpa %s13, 0
    loop: start=0, step=1, limit=4
    $region2: #{tpu_custom_call.1} parent=1 // loop_pre_header
      _
    $region3: #{tpu_custom_call.1} parent=1 // loop_header
      %s16 = sphi 0, %s20
      %p17 = scmp.ge.s32.totalorder %s16, 4
      %s23 = sphi 0, %s35
      %s24 = sphi 0, %s31
      %s25 = sphi 0, %s23
      %s26 = sphi 0, %s24
      %s27 = sphi 0, %s25
      %s28 = sphi 0, %s26
      %s40 = sphi 0, %s42
      %s43 = sphi 0, %s40
      %s44 = sphi 0, %s43
      %s60 = sphi 0, %s44
      %s66 = sphi 0, %s68
      %s69 = sphi 0, %s66
      %s70 = sphi 0, %s69
      %s86 = sphi 0, %s70
      %s90 = sphi 0, %s90
      %s92 = sphi 0, %s90
      %s93 = sphi 0, %s92
      %s107 = sphi 0, %s93
      %s111 = sphi 0, %s111
      %s113 = sphi 0, %s111
      %s114 = sphi 0, %s113
      %s128 = sphi 0, %s114
      %s134 = sphi 0, %s136
      %s137 = sphi 0, %s134
      %s138 = sphi 0, %s137
      %s154 = sphi 0, %s138
    $region4: #{tpu_custom_call.1} parent=1 // loop_header_branch
      %19 = sbr.rel (%p17) target = $region8
    $region5: #{tpu_custom_call.1} parent=1 // loop_body
      %s21 = ssub.s32 %s16, 1
      %s22 = ssub.s32 %s16, 2
      %s29 = sadd.s32 1, %s24
      %p30 = scmp.ge.s32.totalorder %s29, 1
      %s31 = scalar_select %p30, 0, %s29
      %s32 = sadd.s32 1, %s23
      %s33 = scalar_select %p30, %s32, %s23
      %p34 = scmp.ge.s32.totalorder %s33, 2
      %s35 = scalar_select %p34, 0, %s33
      %s36 = ssub.s32 %s23, %s35
      %s37 = ssub.s32 %s24, %s31
      %s38 = sor.u32 %s36, %s37
      %p39 = scmp.eq.s32.totalorder %s38, 0
      %s41 = sadd.s32 %s40, 1
      %s42 = scalar_select %p39, %s40, %s41
      %p45 = pneg %p39
      %p46 = scmp.eq.s32.totalorder %s16, 1
      %p47 = por %p45, %p46
      %p48 = scmp.ne.s32.totalorder %s40, %s43
      %p49 = scmp.eq.s32.totalorder %s16, 0
      %p50 = por %p48, %p49
      %p51 = scmp.ne.s32.totalorder %s40, %s43
      %p52 = scmp.eq.s32.totalorder %s21, 1
      %p53 = por %p51, %p52
      %p54 = scmp.ne.s32.totalorder %s43, %s44
      %p55 = scmp.eq.s32.totalorder %s21, 0
      %p56 = por %p54, %p55
      %p57 = scmp.ne.s32.totalorder %s43, %s44
      %p58 = scmp.eq.s32.totalorder %s22, 1
      %p59 = por %p57, %p58
      %p61 = scmp.ne.s32.totalorder %s44, %s60
      %p62 = scmp.eq.s32.totalorder %s22, 0
      %p63 = por %p61, %p62
      %s64 = ssub.s32 %s24, %s31
      %p65 = scmp.eq.s32.totalorder %s64, 0
      %s67 = sadd.s32 %s66, 1
      %s68 = scalar_select %p65, %s66, %s67
      %p71 = pneg %p65
      %p72 = scmp.eq.s32.totalorder %s16, 1
      %p73 = por %p71, %p72
      %p74 = scmp.ne.s32.totalorder %s66, %s69
      %p75 = scmp.eq.s32.totalorder %s16, 0
      %p76 = por %p74, %p75
      %p77 = scmp.ne.s32.totalorder %s66, %s69
      %p78 = scmp.eq.s32.totalorder %s21, 1
      %p79 = por %p77, %p78
      %p80 = scmp.ne.s32.totalorder %s69, %s70
      %p81 = scmp.eq.s32.totalorder %s21, 0
      %p82 = por %p80, %p81
      %p83 = scmp.ne.s32.totalorder %s69, %s70
      %p84 = scmp.eq.s32.totalorder %s22, 1
      %p85 = por %p83, %p84
      %p87 = scmp.ne.s32.totalorder %s70, %s86
      %p88 = scmp.eq.s32.totalorder %s22, 0
      %p89 = por %p87, %p88
      %s91 = sadd.s32 %s90, 1
      %p94 = scmp.eq.s32.totalorder %s16, 1
      %p95 = scmp.ne.s32.totalorder %s90, %s92
      %p96 = scmp.eq.s32.totalorder %s16, 0
      %p97 = por %p95, %p96
      %p98 = scmp.ne.s32.totalorder %s90, %s92
      %p99 = scmp.eq.s32.totalorder %s21, 1
      %p100 = por %p98, %p99
      %p101 = scmp.ne.s32.totalorder %s92, %s93
      %p102 = scmp.eq.s32.totalorder %s21, 0
      %p103 = por %p101, %p102
      %p104 = scmp.ne.s32.totalorder %s92, %s93
      %p105 = scmp.eq.s32.totalorder %s22, 1
      %p106 = por %p104, %p105
      %p108 = scmp.ne.s32.totalorder %s93, %s107
      %p109 = scmp.eq.s32.totalorder %s22, 0
      %p110 = por %p108, %p109
      %s112 = sadd.s32 %s111, 1
      %p115 = scmp.eq.s32.totalorder %s16, 1
      %p116 = scmp.ne.s32.totalorder %s111, %s113
      %p117 = scmp.eq.s32.totalorder %s16, 0
      %p118 = por %p116, %p117
      %p119 = scmp.ne.s32.totalorder %s111, %s113
      %p120 = scmp.eq.s32.totalorder %s21, 1
      %p121 = por %p119, %p120
      %p122 = scmp.ne.s32.totalorder %s113, %s114
      %p123 = scmp.eq.s32.totalorder %s21, 0
      %p124 = por %p122, %p123
      %p125 = scmp.ne.s32.totalorder %s113, %s114
      %p126 = scmp.eq.s32.totalorder %s22, 1
      %p127 = por %p125, %p126
      %p129 = scmp.ne.s32.totalorder %s114, %s128
      %p130 = scmp.eq.s32.totalorder %s22, 0
      %p131 = por %p129, %p130
      %s132 = ssub.s32 %s23, %s35
      %p133 = scmp.eq.s32.totalorder %s132, 0
      %s135 = sadd.s32 %s134, 1
      %s136 = scalar_select %p133, %s134, %s135
      %p139 = pneg %p133
      %p140 = scmp.eq.s32.totalorder %s16, 1
      %p141 = por %p139, %p140
      %p142 = scmp.ne.s32.totalorder %s134, %s137
      %p143 = scmp.eq.s32.totalorder %s16, 0
      %p144 = por %p142, %p143
      %p145 = scmp.ne.s32.totalorder %s134, %s137
      %p146 = scmp.eq.s32.totalorder %s21, 1
      %p147 = por %p145, %p146
      %p148 = scmp.ne.s32.totalorder %s137, %s138
      %p149 = scmp.eq.s32.totalorder %s21, 0
      %p150 = por %p148, %p149
      %p151 = scmp.ne.s32.totalorder %s137, %s138
      %p152 = scmp.eq.s32.totalorder %s22, 1
      %p153 = por %p151, %p152
      %p155 = scmp.ne.s32.totalorder %s138, %s154
      %p156 = scmp.eq.s32.totalorder %s22, 0
      %p157 = por %p155, %p156
      %p158 = scmp.le.s32.totalorder 1, %s16
      %p159 = scmp.lt.s32.totalorder %s16, 3
      %p160 = pnand %p158, %p159
      %p161 = pneg %p160
      // Predicated region
      $region9: #{tpu_custom_call.1} parent=5 // pred_check
        _
      $region10: #{tpu_custom_call.1} parent=5 // pred_check_branch
        %163 = sbr.rel (%p160) target = $region12
      $region11: #{tpu_custom_call.1} parent=5 // pred_region
        %s164 = ssub.s32 %s16, 1
        // Predicated region
        $region13: #{tpu_custom_call.1} parent=11 // pred_check
          %p165 = pneg %p82
        $region14: #{tpu_custom_call.1} parent=11 // pred_check_branch
          %167 = sbr.rel (%p165) target = $region16
        $region15: #{tpu_custom_call.1} parent=11 // pred_region
          %s168 = smul.u32 64, %s26
          %p169 = scmp.lt.s32.totalorder %s168, 63
          %s170 = scalar_select %p169, %s168, 63
          %s171 = smul.addr %s170, 4
          %s172 = scalar_lea.vmem %s1, %s171
          %s173 = smul.u32 64, %s26
        $region16: #{tpu_custom_call.1} parent=11 // pred_fallthru
          _
        // Predicated region
        $region17: #{tpu_custom_call.1} parent=11 // pred_check
          %p174 = pneg %p103
        $region18: #{tpu_custom_call.1} parent=11 // pred_check_branch
          %176 = sbr.rel (%p174) target = $region20
        $region19: #{tpu_custom_call.1} parent=11 // pred_region
          _
        $region20: #{tpu_custom_call.1} parent=11 // pred_fallthru
          _
        // Predicated region
        $region21: #{tpu_custom_call.1} parent=11 // pred_check
          %p177 = pneg %p124
        $region22: #{tpu_custom_call.1} parent=11 // pred_check_branch
          %179 = sbr.rel (%p177) target = $region24
        $region23: #{tpu_custom_call.1} parent=11 // pred_region
          _
        $region24: #{tpu_custom_call.1} parent=11 // pred_fallthru
          _
      $region12: #{tpu_custom_call.1} parent=5 // pred_fallthru
        _
      %p180 = scmp.lt.s32.totalorder %s16, 2
      // Predicated region
      $region25: #{tpu_custom_call.1} parent=5 // pred_check
        %p181 = pneg %p180
      $region26: #{tpu_custom_call.1} parent=5 // pred_check_branch
        %183 = sbr.rel (%p181) target = $region28
      $region27: #{tpu_custom_call.1} parent=5 // pred_region
        // Predicated region
        $region29: #{tpu_custom_call.1} parent=27 // pred_check
          %p184 = pneg %p50
        $region30: #{tpu_custom_call.1} parent=27 // pred_check_branch
          %186 = sbr.rel (%p184) target = $region32
        $region31: #{tpu_custom_call.1} parent=27 // pred_region
          %s187 = sand.u32 %s40, 1
          %s188 = scalar_lea.sflag [#allocation3], %s187
          %s189 = sand.u32 %s40, 1
          %s190 = smul.addr %s189, 512
          %s191 = scalar_lea.vmem [#allocation2], %s190
          %s192 = smul.u32 32, %s23
          %s193 = smul.u32 4, %s24
          %s195 = ssub.s32 8192, 8192
          %196 = vsyncadd %s188, %s195
          %s197 = smul.addr %s192, 4
          %s198 = sadd.s32 %s193, %s197
          %s199 = smul.addr %s198, 64
          %s200 = scalar_lea.hbm %s0, %s199
          %s201 = sshll.u32 %s191, 4
          %s202 = int_to_ptr.vmem [resolvable:$true] %s201
          %207 = dma.hbm_to_vmem [thread:$0]  %s200, 8192, %s202, %s188, 256, 256, 16
        $region32: #{tpu_custom_call.1} parent=27 // pred_fallthru
          _
      $region28: #{tpu_custom_call.1} parent=5 // pred_fallthru
        _
      %p208 = scmp.le.s32.totalorder 1, %s16
      %p209 = scmp.lt.s32.totalorder %s16, 3
      %p210 = pnand %p208, %p209
      %p211 = pneg %p210
      // Predicated region
      $region33: #{tpu_custom_call.1} parent=5 // pred_check
        _
      $region34: #{tpu_custom_call.1} parent=5 // pred_check_branch
        %213 = sbr.rel (%p210) target = $region36
      $region35: #{tpu_custom_call.1} parent=5 // pred_region
        %s214 = ssub.s32 %s16, 1
        %s215 = sand.u32 %s43, 1
        %s216 = scalar_lea.sflag [#allocation3], %s215
        %s217 = sand.u32 %s43, 1
        %s218 = smul.addr %s217, 512
        %s219 = scalar_lea.vmem [#allocation2], %s218
        // Predicated region
        $region37: #{tpu_custom_call.1} parent=35 // pred_check
          %p220 = pneg %p56
        $region38: #{tpu_custom_call.1} parent=35 // pred_check_branch
          %222 = sbr.rel (%p220) target = $region40
        $region39: #{tpu_custom_call.1} parent=35 // pred_region
          %223 = dma.done %s216, 8192
        $region40: #{tpu_custom_call.1} parent=35 // pred_fallthru
          _
        %s224 = sand.u32 %s43, 1
        %s225 = scalar_lea.sflag [#allocation3], %s224
        %s226 = sand.u32 %s43, 1
        %s227 = smul.addr %s226, 512
        %s228 = scalar_lea.vmem [#allocation2], %s227
        %p229 = pneg %p56
        %p230 = pneg %p53
        %s231 = smul.u32 64, %s26
        %p232 = scmp.lt.s32.totalorder %s231, 63
        %s233 = scalar_select %p232, %s231, 63
        %s234 = smul.addr %s233, 4
        %s235 = scalar_lea.vmem %s1, %s234
        %p236 = pneg %p82
        %p237 = pneg %p79
        %p238 = pneg %p103
        %p239 = pneg %p100
        %p240 = pneg %p124
        %p241 = pneg %p121
        %p242 = pneg %p150
        %p243 = pneg %p147
        %s244 = sand.u32 %s137, 1
        %s245 = scalar_lea.sflag [#allocation4], %s244
        %s246 = sand.u32 %s137, 1
        %s247 = smul.addr %s246, 256
        %s248 = scalar_lea.vmem [#allocation5], %s247
        %s249 = smul.u32 32, %s25
        %s250 = smul.u32 4, %s26
        %s251 = smul.u32 64, %s26
        %p252 = scmp.lt.s32.totalorder %s251, 63
        %s253 = scalar_select %p252, %s251, 63
        %s254 = smul.addr %s253, 4
        %s255 = scalar_lea.vmem %s1, %s254
        %s256 = smul.u32 64, %s26
        %s257 = smul.u32 32, %s25
        %v259 = vld [vmem:[%s255] sm:$0xf]
        %v260 = vld [vmem:[%s255 + $0x4] sm:$0xf]
        %v261 = vld [vmem:[%s255 + $0x8] sm:$0xf]
        %v262 = vld [vmem:[%s255 + $0xc] sm:$0xf]
        %v263 = vld [vmem:[%s255 + $0x10] sm:$0xf]
        %v264 = vld [vmem:[%s255 + $0x14] sm:$0xf]
        %v265 = vld [vmem:[%s255 + $0x18] sm:$0xf]
        %v266 = vld [vmem:[%s255 + $0x1c] sm:$0xf]
        %v267 = vld [vmem:[%s255 + $0x20] sm:$0xf]
        %v268 = vld [vmem:[%s255 + $0x24] sm:$0xf]
        %v269 = vld [vmem:[%s255 + $0x28] sm:$0xf]
        %v270 = vld [vmem:[%s255 + $0x2c] sm:$0xf]
        %v271 = vld [vmem:[%s255 + $0x30] sm:$0xf]
        %v272 = vld [vmem:[%s255 + $0x34] sm:$0xf]
        %v273 = vld [vmem:[%s255 + $0x38] sm:$0xf]
        %v274 = vld [vmem:[%s255 + $0x3c] sm:$0xf]
        %v275 = vld [vmem:[%s255 + $0x40] sm:$0xf]
        %v276 = vld [vmem:[%s255 + $0x44] sm:$0xf]
        %v277 = vld [vmem:[%s255 + $0x48] sm:$0xf]
        %v278 = vld [vmem:[%s255 + $0x4c] sm:$0xf]
        %v279 = vld [vmem:[%s255 + $0x50] sm:$0xf]
        %v280 = vld [vmem:[%s255 + $0x54] sm:$0xf]
        %v281 = vld [vmem:[%s255 + $0x58] sm:$0xf]
        %v282 = vld [vmem:[%s255 + $0x5c] sm:$0xf]
        %v283 = vld [vmem:[%s255 + $0x60] sm:$0xf]
        %v284 = vld [vmem:[%s255 + $0x64] sm:$0xf]
        %v285 = vld [vmem:[%s255 + $0x68] sm:$0xf]
        %v286 = vld [vmem:[%s255 + $0x6c] sm:$0xf]
        %v287 = vld [vmem:[%s255 + $0x70] sm:$0xf]
        %v288 = vld [vmem:[%s255 + $0x74] sm:$0xf]
        %v289 = vld [vmem:[%s255 + $0x78] sm:$0xf]
        %v290 = vld [vmem:[%s255 + $0x7c] sm:$0xf]
        %v291 = vld [vmem:[%s255 + $0x80] sm:$0xf]
        %v292 = vld [vmem:[%s255 + $0x84] sm:$0xf]
        %v293 = vld [vmem:[%s255 + $0x88] sm:$0xf]
        %v294 = vld [vmem:[%s255 + $0x8c] sm:$0xf]
        %v295 = vld [vmem:[%s255 + $0x90] sm:$0xf]
        %v296 = vld [vmem:[%s255 + $0x94] sm:$0xf]
        %v297 = vld [vmem:[%s255 + $0x98] sm:$0xf]
        %v298 = vld [vmem:[%s255 + $0x9c] sm:$0xf]
        %v299 = vld [vmem:[%s255 + $0xa0] sm:$0xf]
        %v300 = vld [vmem:[%s255 + $0xa4] sm:$0xf]
        %v301 = vld [vmem:[%s255 + $0xa8] sm:$0xf]
        %v302 = vld [vmem:[%s255 + $0xac] sm:$0xf]
        %v303 = vld [vmem:[%s255 + $0xb0] sm:$0xf]
        %v304 = vld [vmem:[%s255 + $0xb4] sm:$0xf]
        %v305 = vld [vmem:[%s255 + $0xb8] sm:$0xf]
        %v306 = vld [vmem:[%s255 + $0xbc] sm:$0xf]
        %v307 = vld [vmem:[%s255 + $0xc0] sm:$0xf]
        %v308 = vld [vmem:[%s255 + $0xc4] sm:$0xf]
        %v309 = vld [vmem:[%s255 + $0xc8] sm:$0xf]
        %v310 = vld [vmem:[%s255 + $0xcc] sm:$0xf]
        %v311 = vld [vmem:[%s255 + $0xd0] sm:$0xf]
        %v312 = vld [vmem:[%s255 + $0xd4] sm:$0xf]
        %v313 = vld [vmem:[%s255 + $0xd8] sm:$0xf]
        %v314 = vld [vmem:[%s255 + $0xdc] sm:$0xf]
        %v315 = vld [vmem:[%s255 + $0xe0] sm:$0xf]
        %v316 = vld [vmem:[%s255 + $0xe4] sm:$0xf]
        %v317 = vld [vmem:[%s255 + $0xe8] sm:$0xf]
        %v318 = vld [vmem:[%s255 + $0xec] sm:$0xf]
        %v319 = vld [vmem:[%s255 + $0xf0] sm:$0xf]
        %v320 = vld [vmem:[%s255 + $0xf4] sm:$0xf]
        %v321 = vld [vmem:[%s255 + $0xf8] sm:$0xf]
        %v322 = vld [vmem:[%s255 + $0xfc] sm:$0xf]
        %v323 = vld [vmem:[%s2] sm:$0xf]
        %v324 = vld [vmem:[%s2 + $0x4] sm:$0xf]
        %v325 = vld [vmem:[%s2 + $0x8] sm:$0xf]
        %v326 = vld [vmem:[%s2 + $0xc] sm:$0xf]
        %v391 = vunpack.c.l.b16 %v259
        %v392 = vunpack.c.l.b16 %v260
        %v393 = vunpack.c.l.b16 %v261
        %v394 = vunpack.c.l.b16 %v262
        %v395 = vunpack.c.l.b16 %v263
        %v396 = vunpack.c.l.b16 %v264
        %v397 = vunpack.c.l.b16 %v265
        %v398 = vunpack.c.l.b16 %v266
        %v399 = vunpack.c.l.b16 %v267
        %v400 = vunpack.c.l.b16 %v268
        %v401 = vunpack.c.l.b16 %v269
        %v402 = vunpack.c.l.b16 %v270
        %v403 = vunpack.c.l.b16 %v271
        %v404 = vunpack.c.l.b16 %v272
        %v405 = vunpack.c.l.b16 %v273
        %v406 = vunpack.c.l.b16 %v274
        %v407 = vunpack.c.l.b16 %v275
        %v408 = vunpack.c.l.b16 %v276
        %v409 = vunpack.c.l.b16 %v277
        %v410 = vunpack.c.l.b16 %v278
        %v411 = vunpack.c.l.b16 %v279
        %v412 = vunpack.c.l.b16 %v280
        %v413 = vunpack.c.l.b16 %v281
        %v414 = vunpack.c.l.b16 %v282
        %v415 = vunpack.c.l.b16 %v283
        %v416 = vunpack.c.l.b16 %v284
        %v417 = vunpack.c.l.b16 %v285
        %v418 = vunpack.c.l.b16 %v286
        %v419 = vunpack.c.l.b16 %v287
        %v420 = vunpack.c.l.b16 %v288
        %v421 = vunpack.c.l.b16 %v289
        %v422 = vunpack.c.l.b16 %v290
        %v423 = vunpack.c.l.b16 %v291
        %v424 = vunpack.c.l.b16 %v292
        %v425 = vunpack.c.l.b16 %v293
        %v426 = vunpack.c.l.b16 %v294
        %v427 = vunpack.c.l.b16 %v295
        %v428 = vunpack.c.l.b16 %v296
        %v429 = vunpack.c.l.b16 %v297
        %v430 = vunpack.c.l.b16 %v298
        %v431 = vunpack.c.l.b16 %v299
        %v432 = vunpack.c.l.b16 %v300
        %v433 = vunpack.c.l.b16 %v301
        %v434 = vunpack.c.l.b16 %v302
        %v435 = vunpack.c.l.b16 %v303
        %v436 = vunpack.c.l.b16 %v304
        %v437 = vunpack.c.l.b16 %v305
        %v438 = vunpack.c.l.b16 %v306
        %v439 = vunpack.c.l.b16 %v307
        %v440 = vunpack.c.l.b16 %v308
        %v441 = vunpack.c.l.b16 %v309
        %v442 = vunpack.c.l.b16 %v310
        %v443 = vunpack.c.l.b16 %v311
        %v444 = vunpack.c.l.b16 %v312
        %v445 = vunpack.c.l.b16 %v313
        %v446 = vunpack.c.l.b16 %v314
        %v447 = vunpack.c.l.b16 %v315
        %v448 = vunpack.c.l.b16 %v316
        %v449 = vunpack.c.l.b16 %v317
        %v450 = vunpack.c.l.b16 %v318
        %v451 = vunpack.c.l.b16 %v319
        %v452 = vunpack.c.l.b16 %v320
        %v453 = vunpack.c.l.b16 %v321
        %v454 = vunpack.c.l.b16 %v322
        %v455 = vpack.c.b16 %v392, %v391
        %v456 = vpack.c.b16 %v394, %v393
        %v457 = vpack.c.b16 %v396, %v395
        %v458 = vpack.c.b16 %v398, %v397
        %v459 = vpack.c.b16 %v400, %v399
        %v460 = vpack.c.b16 %v402, %v401
        %v461 = vpack.c.b16 %v404, %v403
        %v462 = vpack.c.b16 %v406, %v405
        %v463 = vpack.c.b16 %v408, %v407
        %v464 = vpack.c.b16 %v410, %v409
        %v465 = vpack.c.b16 %v412, %v411
        %v466 = vpack.c.b16 %v414, %v413
        %v467 = vpack.c.b16 %v416, %v415
        %v468 = vpack.c.b16 %v418, %v417
        %v469 = vpack.c.b16 %v420, %v419
        %v470 = vpack.c.b16 %v422, %v421
        %v471 = vpack.c.b16 %v424, %v423
        %v472 = vpack.c.b16 %v426, %v425
        %v473 = vpack.c.b16 %v428, %v427
        %v474 = vpack.c.b16 %v430, %v429
        %v475 = vpack.c.b16 %v432, %v431
        %v476 = vpack.c.b16 %v434, %v433
        %v477 = vpack.c.b16 %v436, %v435
        %v478 = vpack.c.b16 %v438, %v437
        %v479 = vpack.c.b16 %v440, %v439
        %v480 = vpack.c.b16 %v442, %v441
        %v481 = vpack.c.b16 %v444, %v443
        %v482 = vpack.c.b16 %v446, %v445
        %v483 = vpack.c.b16 %v448, %v447
        %v484 = vpack.c.b16 %v450, %v449
        %v485 = vpack.c.b16 %v452, %v451
        %v486 = vpack.c.b16 %v454, %v453
        %v491 = vunpack.c.l.b16 %v323
        %v492 = vunpack.c.l.b16 %v324
        %v493 = vunpack.c.l.b16 %v325
        %v494 = vunpack.c.l.b16 %v326
        %v495 = vpack.c.b16 %v492, %v491
        %v496 = vpack.c.b16 %v494, %v493
        %vm499 = vcmask 261120
        %v501 = vsel %vm499, %v455, 0
        %v504 = vsel %vm499, %v456, 0
        %v507 = vsel %vm499, %v457, 0
        %v510 = vsel %vm499, %v458, 0
        %v513 = vsel %vm499, %v459, 0
        %v516 = vsel %vm499, %v460, 0
        %v519 = vsel %vm499, %v461, 0
        %v522 = vsel %vm499, %v462, 0
        %v525 = vsel %vm499, %v463, 0
        %v528 = vsel %vm499, %v464, 0
        %v531 = vsel %vm499, %v465, 0
        %v534 = vsel %vm499, %v466, 0
        %v537 = vsel %vm499, %v467, 0
        %v540 = vsel %vm499, %v468, 0
        %v543 = vsel %vm499, %v469, 0
        %v546 = vsel %vm499, %v470, 0
        %v549 = vsel %vm499, %v471, 0
        %v552 = vsel %vm499, %v472, 0
        %v555 = vsel %vm499, %v473, 0
        %v558 = vsel %vm499, %v474, 0
        %v561 = vsel %vm499, %v475, 0
        %v564 = vsel %vm499, %v476, 0
        %v567 = vsel %vm499, %v477, 0
        %v570 = vsel %vm499, %v478, 0
        %v573 = vsel %vm499, %v479, 0
        %v576 = vsel %vm499, %v480, 0
        %v579 = vsel %vm499, %v481, 0
        %v582 = vsel %vm499, %v482, 0
        %v585 = vsel %vm499, %v483, 0
        %v588 = vsel %vm499, %v484, 0
        %v591 = vsel %vm499, %v485, 0
        %v594 = vsel %vm499, %v486, 0
        %596 = vmatprep.subr.bf16.mxu0 0
        %597 = vmatpush1.bf16.msra.mxu0 0
        %598 = vmatprep.subr.bf16.mxu0 0
        %599 = vmatpush1.bf16.msra.mxu0 0
        %600 = vmatprep.subr.bf16.mxu0 0
        %601 = vmatpush1.bf16.msra.mxu0 0
        %602 = vmatprep.subr.bf16.mxu0 0
        %603 = vmatpush1.bf16.msra.mxu0 0
        %604 = vmatprep.subr.bf16.mxu0 0
        %605 = vmatpush1.bf16.msra.mxu0 0
        %606 = vmatprep.subr.bf16.mxu0 0
        %607 = vmatpush1.bf16.msra.mxu0 0
        %608 = vmatprep.subr.bf16.mxu0 0
        %609 = vmatpush1.bf16.msra.mxu0 %v496
        %610 = vmatprep.subr.bf16.mxu0 0
        %611 = vmatpush1.bf16.msra.mxu0 %v495
        %612 = vmatprep.subr.bf16.mxu0 0
        %613 = vmatpush2.bf16.msra.mxu0 0
        %614 = vmatprep.subr.bf16.mxu0 0
        %615 = vmatpush2.bf16.msra.mxu0 0
        %616 = vmatprep.subr.bf16.mxu0 0
        %617 = vmatpush2.bf16.msra.mxu0 0
        %618 = vmatprep.subr.bf16.mxu0 0
        %619 = vmatpush2.bf16.msra.mxu0 0
        %620 = vmatprep.subr.bf16.mxu0 0
        %621 = vmatpush2.bf16.msra.mxu0 0
        %622 = vmatprep.subr.bf16.mxu0 0
        %623 = vmatpush2.bf16.msra.mxu0 0
        %624 = vmatprep.subr.bf16.mxu0 0
        %625 = vmatpush2.bf16.msra.mxu0 0
        %626 = vmatprep.subr.bf16.mxu0 0
        %627 = vmatpush2.bf16.msra.mxu0 0
        %628 = vmatprep.mubr.bf16.mxu0 0
        %629 = vmatmul.mubr.bf16.gmra.mxu0 %v501
        %v630 = vpop.f32.mrf.mxu0
        %v631 = vadd.f32 0.0, %v630
        %v632 = vpop.f32.mrf.mxu0
        %v633 = vpop.f32.mrf.mxu0
        %v634 = vadd.f32 0.0, %v633
        %v635 = vpop.f32.mrf.mxu0
        %636 = vmatprep.mubr.bf16.mxu0 0
        %637 = vmatmul.mubr.bf16.gmra.mxu0 %v504
        %v638 = vpop.f32.mrf.mxu0
        %v639 = vadd.f32 0.0, %v638
        %v640 = vpop.f32.mrf.mxu0
        %v641 = vpop.f32.mrf.mxu0
        %v642 = vadd.f32 0.0, %v641
        %v643 = vpop.f32.mrf.mxu0
        %644 = vmatprep.mubr.bf16.mxu0 0
        %645 = vmatmul.mubr.bf16.gmra.mxu0 %v507
        %v646 = vpop.f32.mrf.mxu0
        %v647 = vadd.f32 0.0, %v646
        %v648 = vpop.f32.mrf.mxu0
        %v649 = vpop.f32.mrf.mxu0
        %v650 = vadd.f32 0.0, %v649
        %v651 = vpop.f32.mrf.mxu0
        %652 = vmatprep.mubr.bf16.mxu0 0
        %653 = vmatmul.mubr.bf16.gmra.mxu0 %v510
        %v654 = vpop.f32.mrf.mxu0
        %v655 = vadd.f32 0.0, %v654
        %v656 = vpop.f32.mrf.mxu0
        %v657 = vpop.f32.mrf.mxu0
        %v658 = vadd.f32 0.0, %v657
        %v659 = vpop.f32.mrf.mxu0
        %660 = vmatprep.mubr.bf16.mxu0 0
        %661 = vmatmul.mubr.bf16.gmra.mxu0 %v513
        %v662 = vpop.f32.mrf.mxu0
        %v663 = vadd.f32 0.0, %v662
        %v664 = vpop.f32.mrf.mxu0
        %v665 = vpop.f32.mrf.mxu0
        %v666 = vadd.f32 0.0, %v665
        %v667 = vpop.f32.mrf.mxu0
        %668 = vmatprep.mubr.bf16.mxu0 0
        %669 = vmatmul.mubr.bf16.gmra.mxu0 %v516
        %v670 = vpop.f32.mrf.mxu0
        %v671 = vadd.f32 0.0, %v670
        %v672 = vpop.f32.mrf.mxu0
        %v673 = vpop.f32.mrf.mxu0
        %v674 = vadd.f32 0.0, %v673
        %v675 = vpop.f32.mrf.mxu0
        %676 = vmatprep.mubr.bf16.mxu0 0
        %677 = vmatmul.mubr.bf16.gmra.mxu0 %v519
        %v678 = vpop.f32.mrf.mxu0
        %v679 = vadd.f32 0.0, %v678
        %v680 = vpop.f32.mrf.mxu0
        %v681 = vpop.f32.mrf.mxu0
        %v682 = vadd.f32 0.0, %v681
        %v683 = vpop.f32.mrf.mxu0
        %684 = vmatprep.mubr.bf16.mxu0 0
        %685 = vmatmul.mubr.bf16.gmra.mxu0 %v522
        %v686 = vpop.f32.mrf.mxu0
        %v687 = vadd.f32 0.0, %v686
        %v688 = vpop.f32.mrf.mxu0
        %v689 = vpop.f32.mrf.mxu0
        %v690 = vadd.f32 0.0, %v689
        %v691 = vpop.f32.mrf.mxu0
        %692 = vmatprep.mubr.bf16.mxu0 0
        %693 = vmatmul.mubr.bf16.gmra.mxu0 %v525
        %v694 = vpop.f32.mrf.mxu0
        %v695 = vadd.f32 0.0, %v694
        %v696 = vpop.f32.mrf.mxu0
        %v697 = vpop.f32.mrf.mxu0
        %v698 = vadd.f32 0.0, %v697
        %v699 = vpop.f32.mrf.mxu0
        %700 = vmatprep.mubr.bf16.mxu0 0
        %701 = vmatmul.mubr.bf16.gmra.mxu0 %v528
        %v702 = vpop.f32.mrf.mxu0
        %v703 = vadd.f32 0.0, %v702
        %v704 = vpop.f32.mrf.mxu0
        %v705 = vpop.f32.mrf.mxu0
        %v706 = vadd.f32 0.0, %v705
        %v707 = vpop.f32.mrf.mxu0
        %708 = vmatprep.mubr.bf16.mxu0 0
        %709 = vmatmul.mubr.bf16.gmra.mxu0 %v531
        %v710 = vpop.f32.mrf.mxu0
        %v711 = vadd.f32 0.0, %v710
        %v712 = vpop.f32.mrf.mxu0
        %v713 = vpop.f32.mrf.mxu0
        %v714 = vadd.f32 0.0, %v713
        %v715 = vpop.f32.mrf.mxu0
        %716 = vmatprep.mubr.bf16.mxu0 0
        %717 = vmatmul.mubr.bf16.gmra.mxu0 %v534
        %v718 = vpop.f32.mrf.mxu0
        %v719 = vadd.f32 0.0, %v718
        %v720 = vpop.f32.mrf.mxu0
        %v721 = vpop.f32.mrf.mxu0
        %v722 = vadd.f32 0.0, %v721
        %v723 = vpop.f32.mrf.mxu0
        %724 = vmatprep.mubr.bf16.mxu0 0
        %725 = vmatmul.mubr.bf16.gmra.mxu0 %v537
        %v726 = vpop.f32.mrf.mxu0
        %v727 = vadd.f32 0.0, %v726
        %v728 = vpop.f32.mrf.mxu0
        %v729 = vpop.f32.mrf.mxu0
        %v730 = vadd.f32 0.0, %v729
        %v731 = vpop.f32.mrf.mxu0
        %732 = vmatprep.mubr.bf16.mxu0 0
        %733 = vmatmul.mubr.bf16.gmra.mxu0 %v540
        %v734 = vpop.f32.mrf.mxu0
        %v735 = vadd.f32 0.0, %v734
        %v736 = vpop.f32.mrf.mxu0
        %v737 = vpop.f32.mrf.mxu0
        %v738 = vadd.f32 0.0, %v737
        %v739 = vpop.f32.mrf.mxu0
        %740 = vmatprep.mubr.bf16.mxu0 0
        %741 = vmatmul.mubr.bf16.gmra.mxu0 %v543
        %v742 = vpop.f32.mrf.mxu0
        %v743 = vadd.f32 0.0, %v742
        %v744 = vpop.f32.mrf.mxu0
        %v745 = vpop.f32.mrf.mxu0
        %v746 = vadd.f32 0.0, %v745
        %v747 = vpop.f32.mrf.mxu0
        %748 = vmatprep.mubr.bf16.mxu0 0
        %749 = vmatmul.mubr.bf16.gmra.mxu0 %v546
        %v750 = vpop.f32.mrf.mxu0
        %v751 = vadd.f32 0.0, %v750
        %v752 = vpop.f32.mrf.mxu0
        %v753 = vpop.f32.mrf.mxu0
        %v754 = vadd.f32 0.0, %v753
        %v755 = vpop.f32.mrf.mxu0
        %756 = vmatprep.mubr.bf16.mxu0 0
        %757 = vmatmul.mubr.bf16.gmra.mxu0 %v549
        %v758 = vpop.f32.mrf.mxu0
        %v759 = vadd.f32 0.0, %v758
        %v760 = vpop.f32.mrf.mxu0
        %v761 = vpop.f32.mrf.mxu0
        %v762 = vadd.f32 0.0, %v761
        %v763 = vpop.f32.mrf.mxu0
        %764 = vmatprep.mubr.bf16.mxu0 0
        %765 = vmatmul.mubr.bf16.gmra.mxu0 %v552
        %v766 = vpop.f32.mrf.mxu0
        %v767 = vadd.f32 0.0, %v766
        %v768 = vpop.f32.mrf.mxu0
        %v769 = vpop.f32.mrf.mxu0
        %v770 = vadd.f32 0.0, %v769
        %v771 = vpop.f32.mrf.mxu0
        %772 = vmatprep.mubr.bf16.mxu0 0
        %773 = vmatmul.mubr.bf16.gmra.mxu0 %v555
        %v774 = vpop.f32.mrf.mxu0
        %v775 = vadd.f32 0.0, %v774
        %v776 = vpop.f32.mrf.mxu0
        %v777 = vpop.f32.mrf.mxu0
        %v778 = vadd.f32 0.0, %v777
        %v779 = vpop.f32.mrf.mxu0
        %780 = vmatprep.mubr.bf16.mxu0 0
        %781 = vmatmul.mubr.bf16.gmra.mxu0 %v558
        %v782 = vpop.f32.mrf.mxu0
        %v783 = vadd.f32 0.0, %v782
        %v784 = vpop.f32.mrf.mxu0
        %v785 = vpop.f32.mrf.mxu0
        %v786 = vadd.f32 0.0, %v785
        %v787 = vpop.f32.mrf.mxu0
        %788 = vmatprep.mubr.bf16.mxu0 0
        %789 = vmatmul.mubr.bf16.gmra.mxu0 %v561
        %v790 = vpop.f32.mrf.mxu0
        %v791 = vadd.f32 0.0, %v790
        %v792 = vpop.f32.mrf.mxu0
        %v793 = vpop.f32.mrf.mxu0
        %v794 = vadd.f32 0.0, %v793
        %v795 = vpop.f32.mrf.mxu0
        %796 = vmatprep.mubr.bf16.mxu0 0
        %797 = vmatmul.mubr.bf16.gmra.mxu0 %v564
        %v798 = vpop.f32.mrf.mxu0
        %v799 = vadd.f32 0.0, %v798
        %v800 = vpop.f32.mrf.mxu0
        %v801 = vpop.f32.mrf.mxu0
        %v802 = vadd.f32 0.0, %v801
        %v803 = vpop.f32.mrf.mxu0
        %804 = vmatprep.mubr.bf16.mxu0 0
        %805 = vmatmul.mubr.bf16.gmra.mxu0 %v567
        %v806 = vpop.f32.mrf.mxu0
        %v807 = vadd.f32 0.0, %v806
        %v808 = vpop.f32.mrf.mxu0
        %v809 = vpop.f32.mrf.mxu0
        %v810 = vadd.f32 0.0, %v809
        %v811 = vpop.f32.mrf.mxu0
        %812 = vmatprep.mubr.bf16.mxu0 0
        %813 = vmatmul.mubr.bf16.gmra.mxu0 %v570
        %v814 = vpop.f32.mrf.mxu0
        %v815 = vadd.f32 0.0, %v814
        %v816 = vpop.f32.mrf.mxu0
        %v817 = vpop.f32.mrf.mxu0
        %v818 = vadd.f32 0.0, %v817
        %v819 = vpop.f32.mrf.mxu0
        %820 = vmatprep.mubr.bf16.mxu0 0
        %821 = vmatmul.mubr.bf16.gmra.mxu0 %v573
        %v822 = vpop.f32.mrf.mxu0
        %v823 = vadd.f32 0.0, %v822
        %v824 = vpop.f32.mrf.mxu0
        %v825 = vpop.f32.mrf.mxu0
        %v826 = vadd.f32 0.0, %v825
        %v827 = vpop.f32.mrf.mxu0
        %828 = vmatprep.mubr.bf16.mxu0 0
        %829 = vmatmul.mubr.bf16.gmra.mxu0 %v576
        %v830 = vpop.f32.mrf.mxu0
        %v831 = vadd.f32 0.0, %v830
        %v832 = vpop.f32.mrf.mxu0
        %v833 = vpop.f32.mrf.mxu0
        %v834 = vadd.f32 0.0, %v833
        %v835 = vpop.f32.mrf.mxu0
        %836 = vmatprep.mubr.bf16.mxu0 0
        %837 = vmatmul.mubr.bf16.gmra.mxu0 %v579
        %v838 = vpop.f32.mrf.mxu0
        %v839 = vadd.f32 0.0, %v838
        %v840 = vpop.f32.mrf.mxu0
        %v841 = vpop.f32.mrf.mxu0
        %v842 = vadd.f32 0.0, %v841
        %v843 = vpop.f32.mrf.mxu0
        %844 = vmatprep.mubr.bf16.mxu0 0
        %845 = vmatmul.mubr.bf16.gmra.mxu0 %v582
        %v846 = vpop.f32.mrf.mxu0
        %v847 = vadd.f32 0.0, %v846
        %v848 = vpop.f32.mrf.mxu0
        %v849 = vpop.f32.mrf.mxu0
        %v850 = vadd.f32 0.0, %v849
        %v851 = vpop.f32.mrf.mxu0
        %852 = vmatprep.mubr.bf16.mxu0 0
        %853 = vmatmul.mubr.bf16.gmra.mxu0 %v585
        %v854 = vpop.f32.mrf.mxu0
        %v855 = vadd.f32 0.0, %v854
        %v856 = vpop.f32.mrf.mxu0
        %v857 = vpop.f32.mrf.mxu0
        %v858 = vadd.f32 0.0, %v857
        %v859 = vpop.f32.mrf.mxu0
        %860 = vmatprep.mubr.bf16.mxu0 0
        %861 = vmatmul.mubr.bf16.gmra.mxu0 %v588
        %v862 = vpop.f32.mrf.mxu0
        %v863 = vadd.f32 0.0, %v862
        %v864 = vpop.f32.mrf.mxu0
        %v865 = vpop.f32.mrf.mxu0
        %v866 = vadd.f32 0.0, %v865
        %v867 = vpop.f32.mrf.mxu0
        %868 = vmatprep.mubr.bf16.mxu0 0
        %869 = vmatmul.mubr.bf16.gmra.mxu0 %v591
        %v870 = vpop.f32.mrf.mxu0
        %v871 = vadd.f32 0.0, %v870
        %v872 = vpop.f32.mrf.mxu0
        %v873 = vpop.f32.mrf.mxu0
        %v874 = vadd.f32 0.0, %v873
        %v875 = vpop.f32.mrf.mxu0
        %876 = vmatprep.mubr.bf16.mxu0 0
        %877 = vmatmul.mubr.bf16.gmra.mxu0 %v594
        %v878 = vpop.f32.mrf.mxu0
        %v879 = vadd.f32 0.0, %v878
        %v880 = vpop.f32.mrf.mxu0
        %v881 = vpop.f32.mrf.mxu0
        %v882 = vadd.f32 0.0, %v881
        %v883 = vpop.f32.mrf.mxu0
        %884 = vdwg.mxu0
        %v885 = vpack.c.bf16 %v634, %v631
        %v886 = vpack.c.bf16 %v642, %v639
        %v887 = vpack.c.bf16 %v650, %v647
        %v888 = vpack.c.bf16 %v658, %v655
        %v889 = vpack.c.bf16 %v666, %v663
        %v890 = vpack.c.bf16 %v674, %v671
        %v891 = vpack.c.bf16 %v682, %v679
        %v892 = vpack.c.bf16 %v690, %v687
        %v893 = vpack.c.bf16 %v698, %v695
        %v894 = vpack.c.bf16 %v706, %v703
        %v895 = vpack.c.bf16 %v714, %v711
        %v896 = vpack.c.bf16 %v722, %v719
        %v897 = vpack.c.bf16 %v730, %v727
        %v898 = vpack.c.bf16 %v738, %v735
        %v899 = vpack.c.bf16 %v746, %v743
        %v900 = vpack.c.bf16 %v754, %v751
        %v901 = vpack.c.bf16 %v762, %v759
        %v902 = vpack.c.bf16 %v770, %v767
        %v903 = vpack.c.bf16 %v778, %v775
        %v904 = vpack.c.bf16 %v786, %v783
        %v905 = vpack.c.bf16 %v794, %v791
        %v906 = vpack.c.bf16 %v802, %v799
        %v907 = vpack.c.bf16 %v810, %v807
        %v908 = vpack.c.bf16 %v818, %v815
        %v909 = vpack.c.bf16 %v826, %v823
        %v910 = vpack.c.bf16 %v834, %v831
        %v911 = vpack.c.bf16 %v842, %v839
        %v912 = vpack.c.bf16 %v850, %v847
        %v913 = vpack.c.bf16 %v858, %v855
        %v914 = vpack.c.bf16 %v866, %v863
        %v915 = vpack.c.bf16 %v874, %v871
        %v916 = vpack.c.bf16 %v882, %v879
        %v917 = vld [vmem:[%s219] sm:$0xff]
        %v918 = vld [vmem:[%s219 + $0x8] sm:$0xff]
        %v919 = vld [vmem:[%s219 + $0x10] sm:$0xff]
        %v920 = vld [vmem:[%s219 + $0x18] sm:$0xff]
        %v921 = vld [vmem:[%s219 + $0x20] sm:$0xff]
        %v922 = vld [vmem:[%s219 + $0x28] sm:$0xff]
        %v923 = vld [vmem:[%s219 + $0x30] sm:$0xff]
        %v924 = vld [vmem:[%s219 + $0x38] sm:$0xff]
        %v925 = vld [vmem:[%s219 + $0x40] sm:$0xff]
        %v926 = vld [vmem:[%s219 + $0x48] sm:$0xff]
        %v927 = vld [vmem:[%s219 + $0x50] sm:$0xff]
        %v928 = vld [vmem:[%s219 + $0x58] sm:$0xff]
        %v929 = vld [vmem:[%s219 + $0x60] sm:$0xff]
        %v930 = vld [vmem:[%s219 + $0x68] sm:$0xff]
        %v931 = vld [vmem:[%s219 + $0x70] sm:$0xff]
        %v932 = vld [vmem:[%s219 + $0x78] sm:$0xff]
        %v933 = vld [vmem:[%s219 + $0x80] sm:$0xff]
        %v934 = vld [vmem:[%s219 + $0x88] sm:$0xff]
        %v935 = vld [vmem:[%s219 + $0x90] sm:$0xff]
        %v936 = vld [vmem:[%s219 + $0x98] sm:$0xff]
        %v937 = vld [vmem:[%s219 + $0xa0] sm:$0xff]
        %v938 = vld [vmem:[%s219 + $0xa8] sm:$0xff]
        %v939 = vld [vmem:[%s219 + $0xb0] sm:$0xff]
        %v940 = vld [vmem:[%s219 + $0xb8] sm:$0xff]
        %v941 = vld [vmem:[%s219 + $0xc0] sm:$0xff]
        %v942 = vld [vmem:[%s219 + $0xc8] sm:$0xff]
        %v943 = vld [vmem:[%s219 + $0xd0] sm:$0xff]
        %v944 = vld [vmem:[%s219 + $0xd8] sm:$0xff]
        %v945 = vld [vmem:[%s219 + $0xe0] sm:$0xff]
        %v946 = vld [vmem:[%s219 + $0xe8] sm:$0xff]
        %v947 = vld [vmem:[%s219 + $0xf0] sm:$0xff]
        %v948 = vld [vmem:[%s219 + $0xf8] sm:$0xff]
        %v949 = vld [vmem:[%s219 + $0x100] sm:$0xff]
        %v950 = vld [vmem:[%s219 + $0x108] sm:$0xff]
        %v951 = vld [vmem:[%s219 + $0x110] sm:$0xff]
        %v952 = vld [vmem:[%s219 + $0x118] sm:$0xff]
        %v953 = vld [vmem:[%s219 + $0x120] sm:$0xff]
        %v954 = vld [vmem:[%s219 + $0x128] sm:$0xff]
        %v955 = vld [vmem:[%s219 + $0x130] sm:$0xff]
        %v956 = vld [vmem:[%s219 + $0x138] sm:$0xff]
        %v957 = vld [vmem:[%s219 + $0x140] sm:$0xff]
        %v958 = vld [vmem:[%s219 + $0x148] sm:$0xff]
        %v959 = vld [vmem:[%s219 + $0x150] sm:$0xff]
        %v960 = vld [vmem:[%s219 + $0x158] sm:$0xff]
        %v961 = vld [vmem:[%s219 + $0x160] sm:$0xff]
        %v962 = vld [vmem:[%s219 + $0x168] sm:$0xff]
        %v963 = vld [vmem:[%s219 + $0x170] sm:$0xff]
        %v964 = vld [vmem:[%s219 + $0x178] sm:$0xff]
        %v965 = vld [vmem:[%s219 + $0x180] sm:$0xff]
        %v966 = vld [vmem:[%s219 + $0x188] sm:$0xff]
        %v967 = vld [vmem:[%s219 + $0x190] sm:$0xff]
        %v968 = vld [vmem:[%s219 + $0x198] sm:$0xff]
        %v969 = vld [vmem:[%s219 + $0x1a0] sm:$0xff]
        %v970 = vld [vmem:[%s219 + $0x1a8] sm:$0xff]
        %v971 = vld [vmem:[%s219 + $0x1b0] sm:$0xff]
        %v972 = vld [vmem:[%s219 + $0x1b8] sm:$0xff]
        %v973 = vld [vmem:[%s219 + $0x1c0] sm:$0xff]
        %v974 = vld [vmem:[%s219 + $0x1c8] sm:$0xff]
        %v975 = vld [vmem:[%s219 + $0x1d0] sm:$0xff]
        %v976 = vld [vmem:[%s219 + $0x1d8] sm:$0xff]
        %v977 = vld [vmem:[%s219 + $0x1e0] sm:$0xff]
        %v978 = vld [vmem:[%s219 + $0x1e8] sm:$0xff]
        %v979 = vld [vmem:[%s219 + $0x1f0] sm:$0xff]
        %v980 = vld [vmem:[%s219 + $0x1f8] sm:$0xff]
        %v1045 = vunpack.c.l.b16 %v917
        %v1046 = vunpack.c.h.b16 %v917
        %v1047 = vunpack.c.l.b16 %v918
        %v1048 = vunpack.c.h.b16 %v918
        %v1049 = vunpack.c.l.b16 %v919
        %v1050 = vunpack.c.h.b16 %v919
        %v1051 = vunpack.c.l.b16 %v920
        %v1052 = vunpack.c.h.b16 %v920
        %v1053 = vunpack.c.l.b16 %v921
        %v1054 = vunpack.c.h.b16 %v921
        %v1055 = vunpack.c.l.b16 %v922
        %v1056 = vunpack.c.h.b16 %v922
        %v1057 = vunpack.c.l.b16 %v923
        %v1058 = vunpack.c.h.b16 %v923
        %v1059 = vunpack.c.l.b16 %v924
        %v1060 = vunpack.c.h.b16 %v924
        %v1061 = vunpack.c.l.b16 %v925
        %v1062 = vunpack.c.h.b16 %v925
        %v1063 = vunpack.c.l.b16 %v926
        %v1064 = vunpack.c.h.b16 %v926
        %v1065 = vunpack.c.l.b16 %v927
        %v1066 = vunpack.c.h.b16 %v927
        %v1067 = vunpack.c.l.b16 %v928
        %v1068 = vunpack.c.h.b16 %v928
        %v1069 = vunpack.c.l.b16 %v929
        %v1070 = vunpack.c.h.b16 %v929
        %v1071 = vunpack.c.l.b16 %v930
        %v1072 = vunpack.c.h.b16 %v930
        %v1073 = vunpack.c.l.b16 %v931
        %v1074 = vunpack.c.h.b16 %v931
        %v1075 = vunpack.c.l.b16 %v932
        %v1076 = vunpack.c.h.b16 %v932
        %v1077 = vunpack.c.l.b16 %v933
        %v1078 = vunpack.c.h.b16 %v933
        %v1079 = vunpack.c.l.b16 %v934
        %v1080 = vunpack.c.h.b16 %v934
        %v1081 = vunpack.c.l.b16 %v935
        %v1082 = vunpack.c.h.b16 %v935
        %v1083 = vunpack.c.l.b16 %v936
        %v1084 = vunpack.c.h.b16 %v936
        %v1085 = vunpack.c.l.b16 %v937
        %v1086 = vunpack.c.h.b16 %v937
        %v1087 = vunpack.c.l.b16 %v938
        %v1088 = vunpack.c.h.b16 %v938
        %v1089 = vunpack.c.l.b16 %v939
        %v1090 = vunpack.c.h.b16 %v939
        %v1091 = vunpack.c.l.b16 %v940
        %v1092 = vunpack.c.h.b16 %v940
        %v1093 = vunpack.c.l.b16 %v941
        %v1094 = vunpack.c.h.b16 %v941
        %v1095 = vunpack.c.l.b16 %v942
        %v1096 = vunpack.c.h.b16 %v942
        %v1097 = vunpack.c.l.b16 %v943
        %v1098 = vunpack.c.h.b16 %v943
        %v1099 = vunpack.c.l.b16 %v944
        %v1100 = vunpack.c.h.b16 %v944
        %v1101 = vunpack.c.l.b16 %v945
        %v1102 = vunpack.c.h.b16 %v945
        %v1103 = vunpack.c.l.b16 %v946
        %v1104 = vunpack.c.h.b16 %v946
        %v1105 = vunpack.c.l.b16 %v947
        %v1106 = vunpack.c.h.b16 %v947
        %v1107 = vunpack.c.l.b16 %v948
        %v1108 = vunpack.c.h.b16 %v948
        %v1109 = vunpack.c.l.b16 %v949
        %v1110 = vunpack.c.h.b16 %v949
        %v1111 = vunpack.c.l.b16 %v950
        %v1112 = vunpack.c.h.b16 %v950
        %v1113 = vunpack.c.l.b16 %v951
        %v1114 = vunpack.c.h.b16 %v951
        %v1115 = vunpack.c.l.b16 %v952
        %v1116 = vunpack.c.h.b16 %v952
        %v1117 = vunpack.c.l.b16 %v953
        %v1118 = vunpack.c.h.b16 %v953
        %v1119 = vunpack.c.l.b16 %v954
        %v1120 = vunpack.c.h.b16 %v954
        %v1121 = vunpack.c.l.b16 %v955
        %v1122 = vunpack.c.h.b16 %v955
        %v1123 = vunpack.c.l.b16 %v956
        %v1124 = vunpack.c.h.b16 %v956
        %v1125 = vunpack.c.l.b16 %v957
        %v1126 = vunpack.c.h.b16 %v957
        %v1127 = vunpack.c.l.b16 %v958
        %v1128 = vunpack.c.h.b16 %v958
        %v1129 = vunpack.c.l.b16 %v959
        %v1130 = vunpack.c.h.b16 %v959
        %v1131 = vunpack.c.l.b16 %v960
        %v1132 = vunpack.c.h.b16 %v960
        %v1133 = vunpack.c.l.b16 %v961
        %v1134 = vunpack.c.h.b16 %v961
        %v1135 = vunpack.c.l.b16 %v962
        %v1136 = vunpack.c.h.b16 %v962
        %v1137 = vunpack.c.l.b16 %v963
        %v1138 = vunpack.c.h.b16 %v963
        %v1139 = vunpack.c.l.b16 %v964
        %v1140 = vunpack.c.h.b16 %v964
        %v1141 = vunpack.c.l.b16 %v965
        %v1142 = vunpack.c.h.b16 %v965
        %v1143 = vunpack.c.l.b16 %v966
        %v1144 = vunpack.c.h.b16 %v966
        %v1145 = vunpack.c.l.b16 %v967
        %v1146 = vunpack.c.h.b16 %v967
        %v1147 = vunpack.c.l.b16 %v968
        %v1148 = vunpack.c.h.b16 %v968
        %v1149 = vunpack.c.l.b16 %v969
        %v1150 = vunpack.c.h.b16 %v969
        %v1151 = vunpack.c.l.b16 %v970
        %v1152 = vunpack.c.h.b16 %v970
        %v1153 = vunpack.c.l.b16 %v971
        %v1154 = vunpack.c.h.b16 %v971
        %v1155 = vunpack.c.l.b16 %v972
        %v1156 = vunpack.c.h.b16 %v972
        %v1157 = vunpack.c.l.b16 %v973
        %v1158 = vunpack.c.h.b16 %v973
        %v1159 = vunpack.c.l.b16 %v974
        %v1160 = vunpack.c.h.b16 %v974
        %v1161 = vunpack.c.l.b16 %v975
        %v1162 = vunpack.c.h.b16 %v975
        %v1163 = vunpack.c.l.b16 %v976
        %v1164 = vunpack.c.h.b16 %v976
        %v1165 = vunpack.c.l.b16 %v977
        %v1166 = vunpack.c.h.b16 %v977
        %v1167 = vunpack.c.l.b16 %v978
        %v1168 = vunpack.c.h.b16 %v978
        %v1169 = vunpack.c.l.b16 %v979
        %v1170 = vunpack.c.h.b16 %v979
        %v1171 = vunpack.c.l.b16 %v980
        %v1172 = vunpack.c.h.b16 %v980
        %v1173 = vpack.c.b16 %v1049, %v1045
        %v1174 = vpack.c.b16 %v1050, %v1046
        %v1175 = vpack.c.b16 %v1051, %v1047
        %v1176 = vpack.c.b16 %v1052, %v1048
        %v1177 = vpack.c.b16 %v1057, %v1053
        %v1178 = vpack.c.b16 %v1058, %v1054
        %v1179 = vpack.c.b16 %v1059, %v1055
        %v1180 = vpack.c.b16 %v1060, %v1056
        %v1181 = vpack.c.b16 %v1065, %v1061
        %v1182 = vpack.c.b16 %v1066, %v1062
        %v1183 = vpack.c.b16 %v1067, %v1063
        %v1184 = vpack.c.b16 %v1068, %v1064
        %v1185 = vpack.c.b16 %v1073, %v1069
        %v1186 = vpack.c.b16 %v1074, %v1070
        %v1187 = vpack.c.b16 %v1075, %v1071
        %v1188 = vpack.c.b16 %v1076, %v1072
        %v1189 = vpack.c.b16 %v1081, %v1077
        %v1190 = vpack.c.b16 %v1082, %v1078
        %v1191 = vpack.c.b16 %v1083, %v1079
        %v1192 = vpack.c.b16 %v1084, %v1080
        %v1193 = vpack.c.b16 %v1089, %v1085
        %v1194 = vpack.c.b16 %v1090, %v1086
        %v1195 = vpack.c.b16 %v1091, %v1087
        %v1196 = vpack.c.b16 %v1092, %v1088
        %v1197 = vpack.c.b16 %v1097, %v1093
        %v1198 = vpack.c.b16 %v1098, %v1094
        %v1199 = vpack.c.b16 %v1099, %v1095
        %v1200 = vpack.c.b16 %v1100, %v1096
        %v1201 = vpack.c.b16 %v1105, %v1101
        %v1202 = vpack.c.b16 %v1106, %v1102
        %v1203 = vpack.c.b16 %v1107, %v1103
        %v1204 = vpack.c.b16 %v1108, %v1104
        %v1205 = vpack.c.b16 %v1113, %v1109
        %v1206 = vpack.c.b16 %v1114, %v1110
        %v1207 = vpack.c.b16 %v1115, %v1111
        %v1208 = vpack.c.b16 %v1116, %v1112
        %v1209 = vpack.c.b16 %v1121, %v1117
        %v1210 = vpack.c.b16 %v1122, %v1118
        %v1211 = vpack.c.b16 %v1123, %v1119
        %v1212 = vpack.c.b16 %v1124, %v1120
        %v1213 = vpack.c.b16 %v1129, %v1125
        %v1214 = vpack.c.b16 %v1130, %v1126
        %v1215 = vpack.c.b16 %v1131, %v1127
        %v1216 = vpack.c.b16 %v1132, %v1128
        %v1217 = vpack.c.b16 %v1137, %v1133
        %v1218 = vpack.c.b16 %v1138, %v1134
        %v1219 = vpack.c.b16 %v1139, %v1135
        %v1220 = vpack.c.b16 %v1140, %v1136
        %v1221 = vpack.c.b16 %v1145, %v1141
        %v1222 = vpack.c.b16 %v1146, %v1142
        %v1223 = vpack.c.b16 %v1147, %v1143
        %v1224 = vpack.c.b16 %v1148, %v1144
        %v1225 = vpack.c.b16 %v1153, %v1149
        %v1226 = vpack.c.b16 %v1154, %v1150
        %v1227 = vpack.c.b16 %v1155, %v1151
        %v1228 = vpack.c.b16 %v1156, %v1152
        %v1229 = vpack.c.b16 %v1161, %v1157
        %v1230 = vpack.c.b16 %v1162, %v1158
        %v1231 = vpack.c.b16 %v1163, %v1159
        %v1232 = vpack.c.b16 %v1164, %v1160
        %v1233 = vpack.c.b16 %v1169, %v1165
        %v1234 = vpack.c.b16 %v1170, %v1166
        %v1235 = vpack.c.b16 %v1171, %v1167
        %v1236 = vpack.c.b16 %v1172, %v1168
        %1301 = vmatprep.subr.bf16.mxu0 0
        %1302 = vmatpush1.bf16.msra.mxu0 %v892
        %1303 = vmatprep.subr.bf16.mxu0 0
        %1304 = vmatpush1.bf16.msra.mxu0 %v891
        %1305 = vmatprep.subr.bf16.mxu0 0
        %1306 = vmatpush1.bf16.msra.mxu0 %v890
        %1307 = vmatprep.subr.bf16.mxu0 0
        %1308 = vmatpush1.bf16.msra.mxu0 %v889
        %1309 = vmatprep.subr.bf16.mxu0 0
        %1310 = vmatpush1.bf16.msra.mxu0 %v888
        %1311 = vmatprep.subr.bf16.mxu0 0
        %1312 = vmatpush1.bf16.msra.mxu0 %v887
        %1313 = vmatprep.subr.bf16.mxu0 0
        %1314 = vmatpush1.bf16.msra.mxu0 %v886
        %1315 = vmatprep.subr.bf16.mxu0 0
        %1316 = vmatpush1.bf16.msra.mxu0 %v885
        %1317 = vmatprep.subr.bf16.mxu0 0
        %1318 = vmatpush2.bf16.msra.mxu0 %v900
        %1319 = vmatprep.subr.bf16.mxu0 0
        %1320 = vmatpush2.bf16.msra.mxu0 %v899
        %1321 = vmatprep.subr.bf16.mxu0 0
        %1322 = vmatpush2.bf16.msra.mxu0 %v898
        %1323 = vmatprep.subr.bf16.mxu0 0
        %1324 = vmatpush2.bf16.msra.mxu0 %v897
        %1325 = vmatprep.subr.bf16.mxu0 0
        %1326 = vmatpush2.bf16.msra.mxu0 %v896
        %1327 = vmatprep.subr.bf16.mxu0 0
        %1328 = vmatpush2.bf16.msra.mxu0 %v895
        %1329 = vmatprep.subr.bf16.mxu0 0
        %1330 = vmatpush2.bf16.msra.mxu0 %v894
        %1331 = vmatprep.subr.bf16.mxu0 0
        %1332 = vmatpush2.bf16.msra.mxu0 %v893
        %1333 = vmatprep.mubr.bf16.mxu0 %v1174
        %1334 = vmatmul.mubr.bf16.gmra.mxu0 %v1173
        %v1335 = vpop.f32.mrf.mxu0
        %v1336 = vadd.f32 0.0, %v1335
        %v1337 = vpop.f32.mrf.mxu0
        %v1338 = vpop.f32.mrf.mxu0
        %v1339 = vadd.f32 0.0, %v1338
        %v1340 = vpop.f32.mrf.mxu0
        %1341 = vmatprep.mubr.bf16.mxu0 %v1178
        %1342 = vmatmul.mubr.bf16.gmra.mxu0 %v1177
        %v1343 = vpop.f32.mrf.mxu0
        %v1344 = vadd.f32 0.0, %v1343
        %v1345 = vpop.f32.mrf.mxu0
        %v1346 = vpop.f32.mrf.mxu0
        %v1347 = vadd.f32 0.0, %v1346
        %v1348 = vpop.f32.mrf.mxu0
        %1349 = vmatprep.mubr.bf16.mxu0 %v1182
        %1350 = vmatmul.mubr.bf16.gmra.mxu0 %v1181
        %v1351 = vpop.f32.mrf.mxu0
        %v1352 = vadd.f32 0.0, %v1351
        %v1353 = vpop.f32.mrf.mxu0
        %v1354 = vpop.f32.mrf.mxu0
        %v1355 = vadd.f32 0.0, %v1354
        %v1356 = vpop.f32.mrf.mxu0
        %1357 = vmatprep.mubr.bf16.mxu0 %v1186
        %1358 = vmatmul.mubr.bf16.gmra.mxu0 %v1185
        %v1359 = vpop.f32.mrf.mxu0
        %v1360 = vadd.f32 0.0, %v1359
        %v1361 = vpop.f32.mrf.mxu0
        %v1362 = vpop.f32.mrf.mxu0
        %v1363 = vadd.f32 0.0, %v1362
        %v1364 = vpop.f32.mrf.mxu0
        %1365 = vmatprep.mubr.bf16.mxu0 %v1190
        %1366 = vmatmul.mubr.bf16.gmra.mxu0 %v1189
        %v1367 = vpop.f32.mrf.mxu0
        %v1368 = vadd.f32 0.0, %v1367
        %v1369 = vpop.f32.mrf.mxu0
        %v1370 = vpop.f32.mrf.mxu0
        %v1371 = vadd.f32 0.0, %v1370
        %v1372 = vpop.f32.mrf.mxu0
        %1373 = vmatprep.mubr.bf16.mxu0 %v1194
        %1374 = vmatmul.mubr.bf16.gmra.mxu0 %v1193
        %v1375 = vpop.f32.mrf.mxu0
        %v1376 = vadd.f32 0.0, %v1375
        %v1377 = vpop.f32.mrf.mxu0
        %v1378 = vpop.f32.mrf.mxu0
        %v1379 = vadd.f32 0.0, %v1378
        %v1380 = vpop.f32.mrf.mxu0
        %1381 = vmatprep.mubr.bf16.mxu0 %v1198
        %1382 = vmatmul.mubr.bf16.gmra.mxu0 %v1197
        %v1383 = vpop.f32.mrf.mxu0
        %v1384 = vadd.f32 0.0, %v1383
        %v1385 = vpop.f32.mrf.mxu0
        %v1386 = vpop.f32.mrf.mxu0
        %v1387 = vadd.f32 0.0, %v1386
        %v1388 = vpop.f32.mrf.mxu0
        %1389 = vmatprep.mubr.bf16.mxu0 %v1202
        %1390 = vmatmul.mubr.bf16.gmra.mxu0 %v1201
        %v1391 = vpop.f32.mrf.mxu0
        %v1392 = vadd.f32 0.0, %v1391
        %v1393 = vpop.f32.mrf.mxu0
        %v1394 = vpop.f32.mrf.mxu0
        %v1395 = vadd.f32 0.0, %v1394
        %v1396 = vpop.f32.mrf.mxu0
        %1397 = vmatprep.mubr.bf16.mxu0 %v1206
        %1398 = vmatmul.mubr.bf16.gmra.mxu0 %v1205
        %v1399 = vpop.f32.mrf.mxu0
        %v1400 = vadd.f32 0.0, %v1399
        %v1401 = vpop.f32.mrf.mxu0
        %v1402 = vpop.f32.mrf.mxu0
        %v1403 = vadd.f32 0.0, %v1402
        %v1404 = vpop.f32.mrf.mxu0
        %1405 = vmatprep.mubr.bf16.mxu0 %v1210
        %1406 = vmatmul.mubr.bf16.gmra.mxu0 %v1209
        %v1407 = vpop.f32.mrf.mxu0
        %v1408 = vadd.f32 0.0, %v1407
        %v1409 = vpop.f32.mrf.mxu0
        %v1410 = vpop.f32.mrf.mxu0
        %v1411 = vadd.f32 0.0, %v1410
        %v1412 = vpop.f32.mrf.mxu0
        %1413 = vmatprep.mubr.bf16.mxu0 %v1214
        %1414 = vmatmul.mubr.bf16.gmra.mxu0 %v1213
        %v1415 = vpop.f32.mrf.mxu0
        %v1416 = vadd.f32 0.0, %v1415
        %v1417 = vpop.f32.mrf.mxu0
        %v1418 = vpop.f32.mrf.mxu0
        %v1419 = vadd.f32 0.0, %v1418
        %v1420 = vpop.f32.mrf.mxu0
        %1421 = vmatprep.mubr.bf16.mxu0 %v1218
        %1422 = vmatmul.mubr.bf16.gmra.mxu0 %v1217
        %v1423 = vpop.f32.mrf.mxu0
        %v1424 = vadd.f32 0.0, %v1423
        %v1425 = vpop.f32.mrf.mxu0
        %v1426 = vpop.f32.mrf.mxu0
        %v1427 = vadd.f32 0.0, %v1426
        %v1428 = vpop.f32.mrf.mxu0
        %1429 = vmatprep.mubr.bf16.mxu0 %v1222
        %1430 = vmatmul.mubr.bf16.gmra.mxu0 %v1221
        %v1431 = vpop.f32.mrf.mxu0
        %v1432 = vadd.f32 0.0, %v1431
        %v1433 = vpop.f32.mrf.mxu0
        %v1434 = vpop.f32.mrf.mxu0
        %v1435 = vadd.f32 0.0, %v1434
        %v1436 = vpop.f32.mrf.mxu0
        %1437 = vmatprep.mubr.bf16.mxu0 %v1226
        %1438 = vmatmul.mubr.bf16.gmra.mxu0 %v1225
        %v1439 = vpop.f32.mrf.mxu0
        %v1440 = vadd.f32 0.0, %v1439
        %v1441 = vpop.f32.mrf.mxu0
        %v1442 = vpop.f32.mrf.mxu0
        %v1443 = vadd.f32 0.0, %v1442
        %v1444 = vpop.f32.mrf.mxu0
        %1445 = vmatprep.mubr.bf16.mxu0 %v1230
        %1446 = vmatmul.mubr.bf16.gmra.mxu0 %v1229
        %v1447 = vpop.f32.mrf.mxu0
        %v1448 = vadd.f32 0.0, %v1447
        %v1449 = vpop.f32.mrf.mxu0
        %v1450 = vpop.f32.mrf.mxu0
        %v1451 = vadd.f32 0.0, %v1450
        %v1452 = vpop.f32.mrf.mxu0
        %1453 = vmatprep.mubr.bf16.mxu0 %v1234
        %1454 = vmatmul.mubr.bf16.gmra.mxu0 %v1233
        %v1455 = vpop.f32.mrf.mxu0
        %v1456 = vadd.f32 0.0, %v1455
        %v1457 = vpop.f32.mrf.mxu0
        %v1458 = vpop.f32.mrf.mxu0
        %v1459 = vadd.f32 0.0, %v1458
        %v1460 = vpop.f32.mrf.mxu0
        %1461 = vdwg.mxu0
        %1462 = vmatprep.subr.bf16.mxu0 0
        %1463 = vmatpush1.bf16.msra.mxu0 %v908
        %1464 = vmatprep.subr.bf16.mxu0 0
        %1465 = vmatpush1.bf16.msra.mxu0 %v907
        %1466 = vmatprep.subr.bf16.mxu0 0
        %1467 = vmatpush1.bf16.msra.mxu0 %v906
        %1468 = vmatprep.subr.bf16.mxu0 0
        %1469 = vmatpush1.bf16.msra.mxu0 %v905
        %1470 = vmatprep.subr.bf16.mxu0 0
        %1471 = vmatpush1.bf16.msra.mxu0 %v904
        %1472 = vmatprep.subr.bf16.mxu0 0
        %1473 = vmatpush1.bf16.msra.mxu0 %v903
        %1474 = vmatprep.subr.bf16.mxu0 0
        %1475 = vmatpush1.bf16.msra.mxu0 %v902
        %1476 = vmatprep.subr.bf16.mxu0 0
        %1477 = vmatpush1.bf16.msra.mxu0 %v901
        %1478 = vmatprep.subr.bf16.mxu0 0
        %1479 = vmatpush2.bf16.msra.mxu0 %v916
        %1480 = vmatprep.subr.bf16.mxu0 0
        %1481 = vmatpush2.bf16.msra.mxu0 %v915
        %1482 = vmatprep.subr.bf16.mxu0 0
        %1483 = vmatpush2.bf16.msra.mxu0 %v914
        %1484 = vmatprep.subr.bf16.mxu0 0
        %1485 = vmatpush2.bf16.msra.mxu0 %v913
        %1486 = vmatprep.subr.bf16.mxu0 0
        %1487 = vmatpush2.bf16.msra.mxu0 %v912
        %1488 = vmatprep.subr.bf16.mxu0 0
        %1489 = vmatpush2.bf16.msra.mxu0 %v911
        %1490 = vmatprep.subr.bf16.mxu0 0
        %1491 = vmatpush2.bf16.msra.mxu0 %v910
        %1492 = vmatprep.subr.bf16.mxu0 0
        %1493 = vmatpush2.bf16.msra.mxu0 %v909
        %1494 = vmatprep.mubr.bf16.mxu0 %v1176
        %1495 = vmatmul.mubr.bf16.gmra.mxu0 %v1175
        %v1496 = vpop.f32.mrf.mxu0
        %v1497 = vadd.f32 %v1336, %v1496
        %v1498 = vpop.f32.mrf.mxu0
        %v1499 = vpop.f32.mrf.mxu0
        %v1500 = vadd.f32 %v1339, %v1499
        %v1501 = vpop.f32.mrf.mxu0
        %1502 = vmatprep.mubr.bf16.mxu0 %v1180
        %1503 = vmatmul.mubr.bf16.gmra.mxu0 %v1179
        %v1504 = vpop.f32.mrf.mxu0
        %v1505 = vadd.f32 %v1344, %v1504
        %v1506 = vpop.f32.mrf.mxu0
        %v1507 = vpop.f32.mrf.mxu0
        %v1508 = vadd.f32 %v1347, %v1507
        %v1509 = vpop.f32.mrf.mxu0
        %1510 = vmatprep.mubr.bf16.mxu0 %v1184
        %1511 = vmatmul.mubr.bf16.gmra.mxu0 %v1183
        %v1512 = vpop.f32.mrf.mxu0
        %v1513 = vadd.f32 %v1352, %v1512
        %v1514 = vpop.f32.mrf.mxu0
        %v1515 = vpop.f32.mrf.mxu0
        %v1516 = vadd.f32 %v1355, %v1515
        %v1517 = vpop.f32.mrf.mxu0
        %1518 = vmatprep.mubr.bf16.mxu0 %v1188
        %1519 = vmatmul.mubr.bf16.gmra.mxu0 %v1187
        %v1520 = vpop.f32.mrf.mxu0
        %v1521 = vadd.f32 %v1360, %v1520
        %v1522 = vpop.f32.mrf.mxu0
        %v1523 = vpop.f32.mrf.mxu0
        %v1524 = vadd.f32 %v1363, %v1523
        %v1525 = vpop.f32.mrf.mxu0
        %1526 = vmatprep.mubr.bf16.mxu0 %v1192
        %1527 = vmatmul.mubr.bf16.gmra.mxu0 %v1191
        %v1528 = vpop.f32.mrf.mxu0
        %v1529 = vadd.f32 %v1368, %v1528
        %v1530 = vpop.f32.mrf.mxu0
        %v1531 = vpop.f32.mrf.mxu0
        %v1532 = vadd.f32 %v1371, %v1531
        %v1533 = vpop.f32.mrf.mxu0
        %1534 = vmatprep.mubr.bf16.mxu0 %v1196
        %1535 = vmatmul.mubr.bf16.gmra.mxu0 %v1195
        %v1536 = vpop.f32.mrf.mxu0
        %v1537 = vadd.f32 %v1376, %v1536
        %v1538 = vpop.f32.mrf.mxu0
        %v1539 = vpop.f32.mrf.mxu0
        %v1540 = vadd.f32 %v1379, %v1539
        %v1541 = vpop.f32.mrf.mxu0
        %1542 = vmatprep.mubr.bf16.mxu0 %v1200
        %1543 = vmatmul.mubr.bf16.gmra.mxu0 %v1199
        %v1544 = vpop.f32.mrf.mxu0
        %v1545 = vadd.f32 %v1384, %v1544
        %v1546 = vpop.f32.mrf.mxu0
        %v1547 = vpop.f32.mrf.mxu0
        %v1548 = vadd.f32 %v1387, %v1547
        %v1549 = vpop.f32.mrf.mxu0
        %1550 = vmatprep.mubr.bf16.mxu0 %v1204
        %1551 = vmatmul.mubr.bf16.gmra.mxu0 %v1203
        %v1552 = vpop.f32.mrf.mxu0
        %v1553 = vadd.f32 %v1392, %v1552
        %v1554 = vpop.f32.mrf.mxu0
        %v1555 = vpop.f32.mrf.mxu0
        %v1556 = vadd.f32 %v1395, %v1555
        %v1557 = vpop.f32.mrf.mxu0
        %1558 = vmatprep.mubr.bf16.mxu0 %v1208
        %1559 = vmatmul.mubr.bf16.gmra.mxu0 %v1207
        %v1560 = vpop.f32.mrf.mxu0
        %v1561 = vadd.f32 %v1400, %v1560
        %v1562 = vpop.f32.mrf.mxu0
        %v1563 = vpop.f32.mrf.mxu0
        %v1564 = vadd.f32 %v1403, %v1563
        %v1565 = vpop.f32.mrf.mxu0
        %1566 = vmatprep.mubr.bf16.mxu0 %v1212
        %1567 = vmatmul.mubr.bf16.gmra.mxu0 %v1211
        %v1568 = vpop.f32.mrf.mxu0
        %v1569 = vadd.f32 %v1408, %v1568
        %v1570 = vpop.f32.mrf.mxu0
        %v1571 = vpop.f32.mrf.mxu0
        %v1572 = vadd.f32 %v1411, %v1571
        %v1573 = vpop.f32.mrf.mxu0
        %1574 = vmatprep.mubr.bf16.mxu0 %v1216
        %1575 = vmatmul.mubr.bf16.gmra.mxu0 %v1215
        %v1576 = vpop.f32.mrf.mxu0
        %v1577 = vadd.f32 %v1416, %v1576
        %v1578 = vpop.f32.mrf.mxu0
        %v1579 = vpop.f32.mrf.mxu0
        %v1580 = vadd.f32 %v1419, %v1579
        %v1581 = vpop.f32.mrf.mxu0
        %1582 = vmatprep.mubr.bf16.mxu0 %v1220
        %1583 = vmatmul.mubr.bf16.gmra.mxu0 %v1219
        %v1584 = vpop.f32.mrf.mxu0
        %v1585 = vadd.f32 %v1424, %v1584
        %v1586 = vpop.f32.mrf.mxu0
        %v1587 = vpop.f32.mrf.mxu0
        %v1588 = vadd.f32 %v1427, %v1587
        %v1589 = vpop.f32.mrf.mxu0
        %1590 = vmatprep.mubr.bf16.mxu0 %v1224
        %1591 = vmatmul.mubr.bf16.gmra.mxu0 %v1223
        %v1592 = vpop.f32.mrf.mxu0
        %v1593 = vadd.f32 %v1432, %v1592
        %v1594 = vpop.f32.mrf.mxu0
        %v1595 = vpop.f32.mrf.mxu0
        %v1596 = vadd.f32 %v1435, %v1595
        %v1597 = vpop.f32.mrf.mxu0
        %1598 = vmatprep.mubr.bf16.mxu0 %v1228
        %1599 = vmatmul.mubr.bf16.gmra.mxu0 %v1227
        %v1600 = vpop.f32.mrf.mxu0
        %v1601 = vadd.f32 %v1440, %v1600
        %v1602 = vpop.f32.mrf.mxu0
        %v1603 = vpop.f32.mrf.mxu0
        %v1604 = vadd.f32 %v1443, %v1603
        %v1605 = vpop.f32.mrf.mxu0
        %1606 = vmatprep.mubr.bf16.mxu0 %v1232
        %1607 = vmatmul.mubr.bf16.gmra.mxu0 %v1231
        %v1608 = vpop.f32.mrf.mxu0
        %v1609 = vadd.f32 %v1448, %v1608
        %v1610 = vpop.f32.mrf.mxu0
        %v1611 = vpop.f32.mrf.mxu0
        %v1612 = vadd.f32 %v1451, %v1611
        %v1613 = vpop.f32.mrf.mxu0
        %1614 = vmatprep.mubr.bf16.mxu0 %v1236
        %1615 = vmatmul.mubr.bf16.gmra.mxu0 %v1235
        %v1616 = vpop.f32.mrf.mxu0
        %v1617 = vadd.f32 %v1456, %v1616
        %v1618 = vpop.f32.mrf.mxu0
        %v1619 = vpop.f32.mrf.mxu0
        %v1620 = vadd.f32 %v1459, %v1619
        %v1621 = vpop.f32.mrf.mxu0
        %1622 = vdwg.mxu0
        %p1623 = scmp.eq.s32.totalorder %s26, 0
        // Predicated region
        $region41: #{tpu_custom_call.1} parent=35 // pred_check
          %p1624 = pneg %p1623
        $region42: #{tpu_custom_call.1} parent=35 // pred_check_branch
          %1626 = sbr.rel (%p1624) target = $region44
        $region43: #{tpu_custom_call.1} parent=35 // pred_region
          %v1627 = vld [vmem:[%s3] sm:$0x1]
          %v1629 = vlaneseq
          %v1630 = vshrl.u32 %v1629, 7
          %v1631 = vsub.s32 0, %v1630
          %v1632 = vrot.slane %v1627, %v1631
          %v1634 = vadd.f32 %v1497, %v1632
          %v1635 = vadd.f32 %v1500, %v1632
          %v1636 = vadd.f32 %v1505, %v1632
          %v1637 = vadd.f32 %v1508, %v1632
          %v1638 = vadd.f32 %v1513, %v1632
          %v1639 = vadd.f32 %v1516, %v1632
          %v1640 = vadd.f32 %v1521, %v1632
          %v1641 = vadd.f32 %v1524, %v1632
          %v1642 = vadd.f32 %v1529, %v1632
          %v1643 = vadd.f32 %v1532, %v1632
          %v1644 = vadd.f32 %v1537, %v1632
          %v1645 = vadd.f32 %v1540, %v1632
          %v1646 = vadd.f32 %v1545, %v1632
          %v1647 = vadd.f32 %v1548, %v1632
          %v1648 = vadd.f32 %v1553, %v1632
          %v1649 = vadd.f32 %v1556, %v1632
          %v1650 = vadd.f32 %v1561, %v1632
          %v1651 = vadd.f32 %v1564, %v1632
          %v1652 = vadd.f32 %v1569, %v1632
          %v1653 = vadd.f32 %v1572, %v1632
          %v1654 = vadd.f32 %v1577, %v1632
          %v1655 = vadd.f32 %v1580, %v1632
          %v1656 = vadd.f32 %v1585, %v1632
          %v1657 = vadd.f32 %v1588, %v1632
          %v1658 = vadd.f32 %v1593, %v1632
          %v1659 = vadd.f32 %v1596, %v1632
          %v1660 = vadd.f32 %v1601, %v1632
          %v1661 = vadd.f32 %v1604, %v1632
          %v1662 = vadd.f32 %v1609, %v1632
          %v1663 = vadd.f32 %v1612, %v1632
          %v1664 = vadd.f32 %v1617, %v1632
          %v1665 = vadd.f32 %v1620, %v1632
          %1666 = vst [vmem:[%s248] sm:$0xff] %v1634
          %1667 = vst [vmem:[%s248 + $0x8] sm:$0xff] %v1635
          %1668 = vst [vmem:[%s248 + $0x10] sm:$0xff] %v1636
          %1669 = vst [vmem:[%s248 + $0x18] sm:$0xff] %v1637
          %1670 = vst [vmem:[%s248 + $0x20] sm:$0xff] %v1638
          %1671 = vst [vmem:[%s248 + $0x28] sm:$0xff] %v1639
          %1672 = vst [vmem:[%s248 + $0x30] sm:$0xff] %v1640
          %1673 = vst [vmem:[%s248 + $0x38] sm:$0xff] %v1641
          %1674 = vst [vmem:[%s248 + $0x40] sm:$0xff] %v1642
          %1675 = vst [vmem:[%s248 + $0x48] sm:$0xff] %v1643
          %1676 = vst [vmem:[%s248 + $0x50] sm:$0xff] %v1644
          %1677 = vst [vmem:[%s248 + $0x58] sm:$0xff] %v1645
          %1678 = vst [vmem:[%s248 + $0x60] sm:$0xff] %v1646
          %1679 = vst [vmem:[%s248 + $0x68] sm:$0xff] %v1647
          %1680 = vst [vmem:[%s248 + $0x70] sm:$0xff] %v1648
          %1681 = vst [vmem:[%s248 + $0x78] sm:$0xff] %v1649
          %1682 = vst [vmem:[%s248 + $0x80] sm:$0xff] %v1650
          %1683 = vst [vmem:[%s248 + $0x88] sm:$0xff] %v1651
          %1684 = vst [vmem:[%s248 + $0x90] sm:$0xff] %v1652
          %1685 = vst [vmem:[%s248 + $0x98] sm:$0xff] %v1653
          %1686 = vst [vmem:[%s248 + $0xa0] sm:$0xff] %v1654
          %1687 = vst [vmem:[%s248 + $0xa8] sm:$0xff] %v1655
          %1688 = vst [vmem:[%s248 + $0xb0] sm:$0xff] %v1656
          %1689 = vst [vmem:[%s248 + $0xb8] sm:$0xff] %v1657
          %1690 = vst [vmem:[%s248 + $0xc0] sm:$0xff] %v1658
          %1691 = vst [vmem:[%s248 + $0xc8] sm:$0xff] %v1659
          %1692 = vst [vmem:[%s248 + $0xd0] sm:$0xff] %v1660
          %1693 = vst [vmem:[%s248 + $0xd8] sm:$0xff] %v1661
          %1694 = vst [vmem:[%s248 + $0xe0] sm:$0xff] %v1662
          %1695 = vst [vmem:[%s248 + $0xe8] sm:$0xff] %v1663
          %1696 = vst [vmem:[%s248 + $0xf0] sm:$0xff] %v1664
          %1697 = vst [vmem:[%s248 + $0xf8] sm:$0xff] %v1665
        $region44: #{tpu_custom_call.1} parent=35 // pred_fallthru
          _
        %p1698 = scmp.ne.s32.totalorder %s26, 0
        // Predicated region
        $region45: #{tpu_custom_call.1} parent=35 // pred_check
          %p1699 = pneg %p1698
        $region46: #{tpu_custom_call.1} parent=35 // pred_check_branch
          %1701 = sbr.rel (%p1699) target = $region48
        $region47: #{tpu_custom_call.1} parent=35 // pred_region
          %v1702 = vld [vmem:[%s248] sm:$0xff]
          %v1703 = vld [vmem:[%s248 + $0x8] sm:$0xff]
          %v1704 = vld [vmem:[%s248 + $0x10] sm:$0xff]
          %v1705 = vld [vmem:[%s248 + $0x18] sm:$0xff]
          %v1706 = vld [vmem:[%s248 + $0x20] sm:$0xff]
          %v1707 = vld [vmem:[%s248 + $0x28] sm:$0xff]
          %v1708 = vld [vmem:[%s248 + $0x30] sm:$0xff]
          %v1709 = vld [vmem:[%s248 + $0x38] sm:$0xff]
          %v1710 = vld [vmem:[%s248 + $0x40] sm:$0xff]
          %v1711 = vld [vmem:[%s248 + $0x48] sm:$0xff]
          %v1712 = vld [vmem:[%s248 + $0x50] sm:$0xff]
          %v1713 = vld [vmem:[%s248 + $0x58] sm:$0xff]
          %v1714 = vld [vmem:[%s248 + $0x60] sm:$0xff]
          %v1715 = vld [vmem:[%s248 + $0x68] sm:$0xff]
          %v1716 = vld [vmem:[%s248 + $0x70] sm:$0xff]
          %v1717 = vld [vmem:[%s248 + $0x78] sm:$0xff]
          %v1718 = vld [vmem:[%s248 + $0x80] sm:$0xff]
          %v1719 = vld [vmem:[%s248 + $0x88] sm:$0xff]
          %v1720 = vld [vmem:[%s248 + $0x90] sm:$0xff]
          %v1721 = vld [vmem:[%s248 + $0x98] sm:$0xff]
          %v1722 = vld [vmem:[%s248 + $0xa0] sm:$0xff]
          %v1723 = vld [vmem:[%s248 + $0xa8] sm:$0xff]
          %v1724 = vld [vmem:[%s248 + $0xb0] sm:$0xff]
          %v1725 = vld [vmem:[%s248 + $0xb8] sm:$0xff]
          %v1726 = vld [vmem:[%s248 + $0xc0] sm:$0xff]
          %v1727 = vld [vmem:[%s248 + $0xc8] sm:$0xff]
          %v1728 = vld [vmem:[%s248 + $0xd0] sm:$0xff]
          %v1729 = vld [vmem:[%s248 + $0xd8] sm:$0xff]
          %v1730 = vld [vmem:[%s248 + $0xe0] sm:$0xff]
          %v1731 = vld [vmem:[%s248 + $0xe8] sm:$0xff]
          %v1732 = vld [vmem:[%s248 + $0xf0] sm:$0xff]
          %v1733 = vld [vmem:[%s248 + $0xf8] sm:$0xff]
          %v1734 = vadd.f32 %v1702, %v1497
          %v1735 = vadd.f32 %v1703, %v1500
          %v1736 = vadd.f32 %v1704, %v1505
          %v1737 = vadd.f32 %v1705, %v1508
          %v1738 = vadd.f32 %v1706, %v1513
          %v1739 = vadd.f32 %v1707, %v1516
          %v1740 = vadd.f32 %v1708, %v1521
          %v1741 = vadd.f32 %v1709, %v1524
          %v1742 = vadd.f32 %v1710, %v1529
          %v1743 = vadd.f32 %v1711, %v1532
          %v1744 = vadd.f32 %v1712, %v1537
          %v1745 = vadd.f32 %v1713, %v1540
          %v1746 = vadd.f32 %v1714, %v1545
          %v1747 = vadd.f32 %v1715, %v1548
          %v1748 = vadd.f32 %v1716, %v1553
          %v1749 = vadd.f32 %v1717, %v1556
          %v1750 = vadd.f32 %v1718, %v1561
          %v1751 = vadd.f32 %v1719, %v1564
          %v1752 = vadd.f32 %v1720, %v1569
          %v1753 = vadd.f32 %v1721, %v1572
          %v1754 = vadd.f32 %v1722, %v1577
          %v1755 = vadd.f32 %v1723, %v1580
          %v1756 = vadd.f32 %v1724, %v1585
          %v1757 = vadd.f32 %v1725, %v1588
          %v1758 = vadd.f32 %v1726, %v1593
          %v1759 = vadd.f32 %v1727, %v1596
          %v1760 = vadd.f32 %v1728, %v1601
          %v1761 = vadd.f32 %v1729, %v1604
          %v1762 = vadd.f32 %v1730, %v1609
          %v1763 = vadd.f32 %v1731, %v1612
          %v1764 = vadd.f32 %v1732, %v1617
          %v1765 = vadd.f32 %v1733, %v1620
          %1766 = vst [vmem:[%s248] sm:$0xff] %v1734
          %1767 = vst [vmem:[%s248 + $0x8] sm:$0xff] %v1735
          %1768 = vst [vmem:[%s248 + $0x10] sm:$0xff] %v1736
          %1769 = vst [vmem:[%s248 + $0x18] sm:$0xff] %v1737
          %1770 = vst [vmem:[%s248 + $0x20] sm:$0xff] %v1738
          %1771 = vst [vmem:[%s248 + $0x28] sm:$0xff] %v1739
          %1772 = vst [vmem:[%s248 + $0x30] sm:$0xff] %v1740
          %1773 = vst [vmem:[%s248 + $0x38] sm:$0xff] %v1741
          %1774 = vst [vmem:[%s248 + $0x40] sm:$0xff] %v1742
          %1775 = vst [vmem:[%s248 + $0x48] sm:$0xff] %v1743
          %1776 = vst [vmem:[%s248 + $0x50] sm:$0xff] %v1744
          %1777 = vst [vmem:[%s248 + $0x58] sm:$0xff] %v1745
          %1778 = vst [vmem:[%s248 + $0x60] sm:$0xff] %v1746
          %1779 = vst [vmem:[%s248 + $0x68] sm:$0xff] %v1747
          %1780 = vst [vmem:[%s248 + $0x70] sm:$0xff] %v1748
          %1781 = vst [vmem:[%s248 + $0x78] sm:$0xff] %v1749
          %1782 = vst [vmem:[%s248 + $0x80] sm:$0xff] %v1750
          %1783 = vst [vmem:[%s248 + $0x88] sm:$0xff] %v1751
          %1784 = vst [vmem:[%s248 + $0x90] sm:$0xff] %v1752
          %1785 = vst [vmem:[%s248 + $0x98] sm:$0xff] %v1753
          %1786 = vst [vmem:[%s248 + $0xa0] sm:$0xff] %v1754
          %1787 = vst [vmem:[%s248 + $0xa8] sm:$0xff] %v1755
          %1788 = vst [vmem:[%s248 + $0xb0] sm:$0xff] %v1756
          %1789 = vst [vmem:[%s248 + $0xb8] sm:$0xff] %v1757
          %1790 = vst [vmem:[%s248 + $0xc0] sm:$0xff] %v1758
          %1791 = vst [vmem:[%s248 + $0xc8] sm:$0xff] %v1759
          %1792 = vst [vmem:[%s248 + $0xd0] sm:$0xff] %v1760
          %1793 = vst [vmem:[%s248 + $0xd8] sm:$0xff] %v1761
          %1794 = vst [vmem:[%s248 + $0xe0] sm:$0xff] %v1762
          %1795 = vst [vmem:[%s248 + $0xe8] sm:$0xff] %v1763
          %1796 = vst [vmem:[%s248 + $0xf0] sm:$0xff] %v1764
          %1797 = vst [vmem:[%s248 + $0xf8] sm:$0xff] %v1765
        $region48: #{tpu_custom_call.1} parent=35 // pred_fallthru
          _
        %s1798 = sand.u32 %s137, 1
        %s1799 = scalar_lea.sflag [#allocation4], %s1798
        %s1800 = sand.u32 %s137, 1
        %s1801 = smul.addr %s1800, 256
        %s1802 = scalar_lea.vmem [#allocation5], %s1801
        // Predicated region
        $region49: #{tpu_custom_call.1} parent=35 // pred_check
          %p1803 = pneg %p147
        $region50: #{tpu_custom_call.1} parent=35 // pred_check_branch
          %1805 = sbr.rel (%p1803) target = $region52
        $region51: #{tpu_custom_call.1} parent=35 // pred_region
          %s1806 = smul.u32 32, %s25
          %s1808 = ssub.s32 4096, 4096
          %1809 = vsyncadd %s1799, %s1808
          %s1810 = smul.addr %s1806, 128
          %s1811 = scalar_lea.hbm %s4, %s1810
          %s1812 = sshll.u32 %s1802, 4
          %s1813 = int_to_ptr.vmem [resolvable:$true] %s1812
          %1818 = dma.vmem_to_hbm [thread:$0]  %s1813, 4096, %s1811, %s1799, 128, 128, 8
        $region52: #{tpu_custom_call.1} parent=35 // pred_fallthru
          _
      $region36: #{tpu_custom_call.1} parent=5 // pred_fallthru
        _
      %p1819 = scmp.le.s32.totalorder 2, %s16
      // Predicated region
      $region53: #{tpu_custom_call.1} parent=5 // pred_check
        %p1820 = pneg %p1819
      $region54: #{tpu_custom_call.1} parent=5 // pred_check_branch
        %1822 = sbr.rel (%p1820) target = $region56
      $region55: #{tpu_custom_call.1} parent=5 // pred_region
        %s1823 = ssub.s32 %s16, 2
        // Predicated region
        $region57: #{tpu_custom_call.1} parent=55 // pred_check
          %p1824 = pneg %p153
        $region58: #{tpu_custom_call.1} parent=55 // pred_check_branch
          %1826 = sbr.rel (%p1824) target = $region60
        $region59: #{tpu_custom_call.1} parent=55 // pred_region
          %s1827 = sand.u32 %s138, 1
          %s1828 = scalar_lea.sflag [#allocation4], %s1827
          %s1829 = sand.u32 %s138, 1
          %s1830 = smul.addr %s1829, 256
          %s1831 = scalar_lea.vmem [#allocation5], %s1830
          %1832 = dma.done %s1828, 4096
        $region60: #{tpu_custom_call.1} parent=55 // pred_fallthru
          _
      $region56: #{tpu_custom_call.1} parent=5 // pred_fallthru
        _
    $region6: #{tpu_custom_call.1} parent=1 // loop_footer
      %s20 = sadd.s32 1, %s16
    $region7: #{tpu_custom_call.1} parent=1 // loop_footer_branch
      %15 = sbr.rel target = $region3
    $region8: #{tpu_custom_call.1} parent=1 // loop_exit
      _
    %1833 = vsyncpa [#allocation3], 1
    %s1834 = scalar_lea.sflag [#allocation3], 1
    %1835 = vsyncpa %s1834, 1
    %1836 = vsyncpa [#allocation4], 1
    %s1837 = scalar_lea.sflag [#allocation4], 1
    %1838 = vsyncpa %s1837, 1

</llo_original>
